<compile_context>
chip_gen: v6e
topology: v6e:2x2x1
jax: 0.10.0
libtpu: 0.0.40
codegen_flags: <defaults>
</compile_context>

<pallas_src>
import functools

import jax
import jax.numpy as jnp
from jax.experimental import pallas as pl
from jax.experimental.pallas import tpu as pltpu


def _round_up(v, m):
    return (v + m - 1) // m * m


# ---------------------------------------------------------------------------
# Fused kernel body
# ---------------------------------------------------------------------------
def _fused_gcn_kernel(x_ref, adj_ref, hmask_ref, w1_ref, w2_ref,
                      o_ref, s1_ref, s2_ref, *, tm):
    p = pl.program_id(0)   # phase: 0 -> x@W1, 1 -> relu(adj@s1)*mask @ W2, 2 -> adj@s2
    i = pl.program_id(1)   # row tile
    row0 = pl.multiple_of(i * tm, tm)

    @pl.when(p == 0)
    def _phase0():
        s1 = jnp.dot(x_ref[...], w1_ref[...],
                     preferred_element_type=jnp.float32)
        s1_ref[pl.ds(row0, tm), :] = s1.astype(s1_ref.dtype)

    @pl.when(p == 1)
    def _phase1():
        h = jnp.dot(adj_ref[...], s1_ref[...],
                    preferred_element_type=jnp.float32)
        h = jnp.maximum(h, 0.0)                          # ReLU (f32, VPU)
        h = h * hmask_ref[...].astype(jnp.float32)       # inter-layer dropout mask
        s2 = jnp.dot(h.astype(adj_ref.dtype), w2_ref[...],
                     preferred_element_type=jnp.float32)
        s2_ref[pl.ds(row0, tm), :] = s2.astype(s2_ref.dtype)

    @pl.when(p == 2)
    def _phase2():
        out = jnp.dot(adj_ref[...], s2_ref[...],
                      preferred_element_type=jnp.float32)
        o_ref[...] = out.astype(o_ref.dtype)


# ---------------------------------------------------------------------------
# Wrapper: padding, dropout glue, pallas_call setup
# ---------------------------------------------------------------------------
def gcn_forward(x, adj, w1, w2, *, dropout=0.0, key=None, tm=256,
                compute_dtype=jnp.bfloat16):
    """GCN.forward: dropout -> gc1 -> relu -> dropout -> gc2 (bias=False)."""
    n, f = x.shape
    f_w, h1 = w1.shape
    h1_w, o = w2.shape
    assert f_w == f and h1_w == h1 and adj.shape == (n, n)
    assert tm % 128 == 0

    # --- padded / tiled geometry (lane-dense: multiples of 128) -------------
    n_pad = _round_up(n, 128)
    tm = min(tm, n_pad)
    n_pad = _round_up(n, tm)
    f_pad = _round_up(f, 128)
    h1_pad = _round_up(h1, 128)
    o_pad = _round_up(o, 128)
    n_tiles = n_pad // tm

    # --- dropout glue (identity for the module default dropout=0.0) --------
    # TODO(synk): torch sparse tensors / sparse_dropout have no dense Pallas
    #             equivalent; dense F.dropout semantics are used instead.
    if dropout > 0.0:
        if key is None:
            raise ValueError("dropout > 0 requires a PRNG key")
        k1, k2 = jax.random.split(key)
        keep_x = jax.random.bernoulli(k1, 1.0 - dropout, x.shape)
        x = jnp.where(keep_x, x / (1.0 - dropout), 0.0)
        keep_h = jax.random.bernoulli(k2, 1.0 - dropout, (n, h1))
        hmask = jnp.where(keep_h, 1.0 / (1.0 - dropout), 0.0).astype(compute_dtype)
    else:
        hmask = jnp.ones((n, h1), dtype=compute_dtype)

    # --- zero-pad and cast MXU inputs to bf16 (f32 accumulation in-kernel) --
    x_p = jnp.zeros((n_pad, f_pad), compute_dtype).at[:n, :f].set(x.astype(compute_dtype))
    adj_p = jnp.zeros((n_pad, n_pad), compute_dtype).at[:n, :n].set(adj.astype(compute_dtype))
    w1_p = jnp.zeros((f_pad, h1_pad), compute_dtype).at[:f, :h1].set(w1.astype(compute_dtype))
    w2_p = jnp.zeros((h1_pad, o_pad), compute_dtype).at[:h1, :o].set(w2.astype(compute_dtype))
    hm_p = jnp.ones((n_pad, h1_pad), compute_dtype).at[:n, :h1].set(hmask)

    # --- block index maps (collapse to block 0 in phases that don't use it) -
    x_map = lambda p, i: (jnp.where(p == 0, i, 0), 0)
    adj_map = lambda p, i: (jnp.where(p == 0, 0, i), 0)
    hm_map = lambda p, i: (jnp.where(p == 1, i, 0), 0)
    w_map = lambda p, i: (0, 0)
    out_map = lambda p, i: (jnp.where(p == 2, i, 0), 0)

    # --- cost estimate & VMEM sizing ----------------------------------------
    isz = jnp.dtype(compute_dtype).itemsize
    flops = (2 * n_pad * f_pad * h1_pad + 2 * n_pad * n_pad * h1_pad
             + 2 * n_pad * h1_pad * o_pad + 2 * n_pad * n_pad * o_pad)
    bytes_accessed = ((n_pad * f_pad + 2 * n_pad * n_pad + f_pad * h1_pad
                       + h1_pad * o_pad + n_pad * h1_pad) * isz
                      + n_pad * o_pad * 4)
    vmem_need = (2 * tm * f_pad * isz          # x block (double-buffered)
                 + 2 * tm * n_pad * isz        # adj block
                 + 2 * tm * h1_pad * isz       # dropout-mask block
                 + 2 * f_pad * h1_pad * isz    # W1
                 + 2 * h1_pad * o_pad * isz    # W2
                 + 2 * tm * o_pad * 4          # out block
                 + n_pad * h1_pad * isz        # s1 scratch
                 + n_pad * o_pad * isz)        # s2 scratch
    vmem_limit = int(min(max(2 * vmem_need, 32 * 1024 * 1024), 110 * 1024 * 1024))

    kernel = functools.partial(_fused_gcn_kernel, tm=tm)

    out_p = pl.pallas_call(
        kernel,
        out_shape=jax.ShapeDtypeStruct((n_pad, o_pad), jnp.float32),
        grid_spec=pltpu.PrefetchScalarGridSpec(
            num_scalar_prefetch=0,
            grid=(3, n_tiles),
            in_specs=[
                pl.BlockSpec((tm, f_pad), x_map),        # x
                pl.BlockSpec((tm, n_pad), adj_map),      # adj (row tiles)
                pl.BlockSpec((tm, h1_pad), hm_map),      # inter-layer dropout mask
                pl.BlockSpec((f_pad, h1_pad), w_map),    # W1 (resident)
                pl.BlockSpec((h1_pad, o_pad), w_map),    # W2 (resident)
            ],
            out_specs=pl.BlockSpec((tm, o_pad), out_map),
            scratch_shapes=[
                pltpu.VMEM((n_pad, h1_pad), compute_dtype),  # s1 = x @ W1
                pltpu.VMEM((n_pad, o_pad), compute_dtype),   # s2 = drop(relu(adj@s1)) @ W2
            ],
        ),
        compiler_params=pltpu.CompilerParams(
            dimension_semantics=("arbitrary", "arbitrary"),
            vmem_limit_bytes=vmem_limit,
        ),
        cost_estimate=pl.CostEstimate(
            flops=int(flops), transcendentals=0,
            bytes_accessed=int(bytes_accessed)),
    )(x_p, adj_p, hm_p, w1_p, w2_p)

    return out_p[:n, :o]


# ---------------------------------------------------------------------------
# Parameter init (matches GraphConvolution.reset_parameters, bias=False)
# ---------------------------------------------------------------------------
def init_gc_weight(key, in_features, out_features):
    init_range = jnp.sqrt(6.0 / (in_features + out_features))
    return jax.random.uniform(
        key, (in_features, out_features), dtype=jnp.float32,
        minval=-init_range, maxval=init_range,
    )


if __name__ == "__main__":
    # Small shapes consistent with the module: N nodes, nfeat -> nhid1 -> nout.
    # N is deliberately NOT a multiple of 128 to exercise the padding path,
    # and tm=128 gives a 2-row-tile grid (3 phases x 2 tiles).
    N, NFEAT, NHID1, NOUT = 200, 48, 32, 8

    root = jax.random.PRNGKey(0)
    kx, kadj, kw1, kw2 = jax.random.split(root, 4)

    x = jax.random.normal(kx, (N, NFEAT), dtype=jnp.float32)

    # Simple symmetric row-normalized adjacency with self-loops.
    a = (jax.random.uniform(kadj, (N, N)) < 0.1).astype(jnp.float32)
    a = jnp.maximum(a, a.T) + jnp.eye(N, dtype=jnp.float32)
    adj = a / jnp.sum(a, axis=1, keepdims=True)

    w1 = init_gc_weight(kw1, NFEAT, NHID1)
    w2 = init_gc_weight(kw2, NHID1, NOUT)

    out = gcn_forward(x, adj, w1, w2, dropout=0.0, tm=128)
    out = jax.block_until_ready(out)

    # Reference with the SAME precision policy (bf16 MXU inputs, f32 accum).
    def ref_forward(x, adj, w1, w2, cd=jnp.bfloat16):
        s1 = jnp.dot(x.astype(cd), w1.astype(cd), preferred_element_type=jnp.float32)
        h = jnp.maximum(
            jnp.dot(adj.astype(cd), s1.astype(cd), preferred_element_type=jnp.float32), 0.0)
        s2 = jnp.dot(h.astype(cd), w2.astype(cd), preferred_element_type=jnp.float32)
        return jnp.dot(adj.astype(cd), s2.astype(cd), preferred_element_type=jnp.float32)

    ref = jax.block_until_ready(ref_forward(x, adj, w1, w2))

    assert out.shape == (N, NOUT)
    assert jnp.allclose(out, ref, atol=1e-2, rtol=1e-2), \
        float(jnp.max(jnp.abs(out - ref)))

    print("KERNEL_OK")
</pallas_src>

<mosaic_0001>
module attributes {stable_mosaic.version = 11 : i64} {
  func.func @_fused_gcn_kernel(%arg0: i32, %arg1: i32, %arg2: memref<128x128xbf16, #tpu.memory_space<vmem>>, %arg3: memref<128x256xbf16, #tpu.memory_space<vmem>>, %arg4: memref<128x128xbf16, #tpu.memory_space<vmem>>, %arg5: memref<128x128xbf16, #tpu.memory_space<vmem>>, %arg6: memref<128x128xbf16, #tpu.memory_space<vmem>>, %arg7: memref<128x128xf32, #tpu.memory_space<vmem>>, %arg8: memref<256x128xbf16, #tpu.memory_space<vmem>>, %arg9: memref<256x128xbf16, #tpu.memory_space<vmem>>) attributes {dimension_semantics = [#tpu.dimension_semantics<arbitrary>, #tpu.dimension_semantics<arbitrary>], iteration_bounds = array<i64: 3, 2>, scalar_prefetch = 0 : i64, scratch_operands = 2 : i64, tpu.core_type = #tpu.core_type<tc>, window_params = [{transform_indices = @transform_0, window_bounds = array<i64: 128, 128>}, {transform_indices = @transform_1, window_bounds = array<i64: 128, 256>}, {transform_indices = @transform_2, window_bounds = array<i64: 128, 128>}, {pipeline_mode = #tpu.pipeline_mode<synchronous>, transform_indices = @transform_3, window_bounds = array<i64: 128, 128>}, {pipeline_mode = #tpu.pipeline_mode<synchronous>, transform_indices = @transform_4, window_bounds = array<i64: 128, 128>}, {transform_indices = @transform_5, window_bounds = array<i64: 128, 128>}]} {
    %c128_i32 = arith.constant 128 : i32
    %0 = arith.muli %arg1, %c128_i32 : i32
    %1 = tpu.assume_multiple %0, 128 : i32
    %c0_i32 = arith.constant 0 : i32
    %2 = arith.cmpi eq, %arg0, %c0_i32 : i32
    %3 = arith.extui %2 : i1 to i32
    %c0_i32_0 = arith.constant 0 : i32
    %4 = arith.cmpi ne, %3, %c0_i32_0 : i32
    scf.if %4 {
      %c0 = arith.constant 0 : index
      %c0_3 = arith.constant 0 : index
      %11 = vector.load %arg2[%c0, %c0_3] : memref<128x128xbf16, #tpu.memory_space<vmem>>, vector<128x128xbf16>
      %c0_4 = arith.constant 0 : index
      %c0_5 = arith.constant 0 : index
      %12 = vector.load %arg5[%c0_4, %c0_5] : memref<128x128xbf16, #tpu.memory_space<vmem>>, vector<128x128xbf16>
      %cst = arith.constant dense<0.000000e+00> : vector<128x128xf32>
      %13 = tpu.matmul %11, %12, %cst {dimension_numbers = #tpu.dot_dimension_numbers<[1], [0], [0], [1], [0, 0, 1, 1], [], []>} : vector<128x128xbf16>, vector<128x128xbf16>, vector<128x128xf32> -> vector<128x128xf32>
      %14 = arith.truncf %13 : vector<128x128xf32> to vector<128x128xbf16>
      %15 = arith.index_cast %1 : i32 to index
      %c0_6 = arith.constant 0 : index
      %16 = vector.load %arg8[%15, %c0_6] : memref<256x128xbf16, #tpu.memory_space<vmem>>, vector<128x128xbf16>
      tpu.vector_store %arg8[%15, %c0_6], %14 {strides = array<i32>} : memref<256x128xbf16, #tpu.memory_space<vmem>>, vector<128x128xbf16>,
    } else {
    }
    %c1_i32 = arith.constant 1 : i32
    %5 = arith.cmpi eq, %arg0, %c1_i32 : i32
    %6 = arith.extui %5 : i1 to i32
    %c0_i32_1 = arith.constant 0 : i32
    %7 = arith.cmpi ne, %6, %c0_i32_1 : i32
    scf.if %7 {
      %c0 = arith.constant 0 : index
      %c0_3 = arith.constant 0 : index
      %11 = vector.load %arg3[%c0, %c0_3] : memref<128x256xbf16, #tpu.memory_space<vmem>>, vector<128x256xbf16>
      %c0_4 = arith.constant 0 : index
      %c0_5 = arith.constant 0 : index
      %12 = vector.load %arg8[%c0_4, %c0_5] : memref<256x128xbf16, #tpu.memory_space<vmem>>, vector<256x128xbf16>
      %cst = arith.constant dense<0.000000e+00> : vector<128x128xf32>
      %13 = tpu.matmul %11, %12, %cst {dimension_numbers = #tpu.dot_dimension_numbers<[1], [0], [0], [1], [0, 0, 1, 1], [], []>} : vector<128x256xbf16>, vector<256x128xbf16>, vector<128x128xf32> -> vector<128x128xf32>
      %cst_6 = arith.constant 0.000000e+00 : f32
      %14 = vector.broadcast %cst_6 : f32 to vector<128x128xf32>
      %15 = arith.maximumf %13, %14 : vector<128x128xf32>
      %c0_7 = arith.constant 0 : index
      %c0_8 = arith.constant 0 : index
      %16 = vector.load %arg4[%c0_7, %c0_8] : memref<128x128xbf16, #tpu.memory_space<vmem>>, vector<128x128xbf16>
      %17 = arith.extf %16 : vector<128x128xbf16> to vector<128x128xf32>
      %18 = arith.mulf %15, %17 : vector<128x128xf32>
      %19 = arith.truncf %18 : vector<128x128xf32> to vector<128x128xbf16>
      %c0_9 = arith.constant 0 : index
      %c0_10 = arith.constant 0 : index
      %20 = vector.load %arg6[%c0_9, %c0_10] : memref<128x128xbf16, #tpu.memory_space<vmem>>, vector<128x128xbf16>
      %cst_11 = arith.constant dense<0.000000e+00> : vector<128x128xf32>
      %21 = tpu.matmul %19, %20, %cst_11 {dimension_numbers = #tpu.dot_dimension_numbers<[1], [0], [0], [1], [0, 0, 1, 1], [], []>} : vector<128x128xbf16>, vector<128x128xbf16>, vector<128x128xf32> -> vector<128x128xf32>
      %22 = arith.truncf %21 : vector<128x128xf32> to vector<128x128xbf16>
      %23 = arith.index_cast %1 : i32 to index
      %c0_12 = arith.constant 0 : index
      %24 = vector.load %arg9[%23, %c0_12] : memref<256x128xbf16, #tpu.memory_space<vmem>>, vector<128x128xbf16>
      tpu.vector_store %arg9[%23, %c0_12], %22 {strides = array<i32>} : memref<256x128xbf16, #tpu.memory_space<vmem>>, vector<128x128xbf16>,
    } else {
    }
    %c2_i32 = arith.constant 2 : i32
    %8 = arith.cmpi eq, %arg0, %c2_i32 : i32
    %9 = arith.extui %8 : i1 to i32
    %c0_i32_2 = arith.constant 0 : i32
    %10 = arith.cmpi ne, %9, %c0_i32_2 : i32
    scf.if %10 {
      %c0 = arith.constant 0 : index
      %c0_3 = arith.constant 0 : index
      %11 = vector.load %arg3[%c0, %c0_3] : memref<128x256xbf16, #tpu.memory_space<vmem>>, vector<128x256xbf16>
      %c0_4 = arith.constant 0 : index
      %c0_5 = arith.constant 0 : index
      %12 = vector.load %arg9[%c0_4, %c0_5] : memref<256x128xbf16, #tpu.memory_space<vmem>>, vector<256x128xbf16>
      %cst = arith.constant dense<0.000000e+00> : vector<128x128xf32>
      %13 = tpu.matmul %11, %12, %cst {dimension_numbers = #tpu.dot_dimension_numbers<[1], [0], [0], [1], [0, 0, 1, 1], [], []>} : vector<128x256xbf16>, vector<256x128xbf16>, vector<128x128xf32> -> vector<128x128xf32>
      %c0_6 = arith.constant 0 : index
      %c0_7 = arith.constant 0 : index
      %14 = vector.load %arg7[%c0_6, %c0_7] : memref<128x128xf32, #tpu.memory_space<vmem>>, vector<128x128xf32>
      tpu.vector_store %arg7[%c0_6, %c0_7], %13 {strides = array<i32>} : memref<128x128xf32, #tpu.memory_space<vmem>>, vector<128x128xf32>,
    } else {
    }
    return
  }
  func.func @transform_0(%arg0: i32, %arg1: i32) -> (i32, i32) {
    %c0_i32 = arith.constant 0 : i32
    %0 = arith.cmpi eq, %arg0, %c0_i32 : i32
    %c0_i32_0 = arith.constant 0 : i32
    %1 = arith.select %0, %arg1, %c0_i32_0 : i32
    %c0_i32_1 = arith.constant 0 : i32
    %c0_i32_2 = arith.constant 0 : i32
    return %1, %c0_i32_1 : i32, i32
  }
  func.func @transform_1(%arg0: i32, %arg1: i32) -> (i32, i32) {
    %c0_i32 = arith.constant 0 : i32
    %0 = arith.cmpi eq, %arg0, %c0_i32 : i32
    %c0_i32_0 = arith.constant 0 : i32
    %1 = arith.select %0, %c0_i32_0, %arg1 : i32
    %c0_i32_1 = arith.constant 0 : i32
    %c0_i32_2 = arith.constant 0 : i32
    return %1, %c0_i32_1 : i32, i32
  }
  func.func @transform_2(%arg0: i32, %arg1: i32) -> (i32, i32) {
    %c1_i32 = arith.constant 1 : i32
    %0 = arith.cmpi eq, %arg0, %c1_i32 : i32
    %c0_i32 = arith.constant 0 : i32
    %1 = arith.select %0, %arg1, %c0_i32 : i32
    %c0_i32_0 = arith.constant 0 : i32
    %c0_i32_1 = arith.constant 0 : i32
    return %1, %c0_i32_0 : i32, i32
  }
  func.func @transform_3(%arg0: i32, %arg1: i32) -> (i32, i32) {
    %c0_i32 = arith.constant 0 : i32
    %c0_i32_0 = arith.constant 0 : i32
    %c0_i32_1 = arith.constant 0 : i32
    return %c0_i32, %c0_i32_0 : i32, i32
  }
  func.func @transform_4(%arg0: i32, %arg1: i32) -> (i32, i32) {
    %c0_i32 = arith.constant 0 : i32
    %c0_i32_0 = arith.constant 0 : i32
    %c0_i32_1 = arith.constant 0 : i32
    return %c0_i32, %c0_i32_0 : i32, i32
  }
  func.func @transform_5(%arg0: i32, %arg1: i32) -> (i32, i32) {
    %c2_i32 = arith.constant 2 : i32
    %0 = arith.cmpi eq, %arg0, %c2_i32 : i32
    %c0_i32 = arith.constant 0 : i32
    %1 = arith.select %0, %arg1, %c0_i32 : i32
    %c0_i32_0 = arith.constant 0 : i32
    %c0_i32_1 = arith.constant 0 : i32
    return %1, %c0_i32_0 : i32, i32
  }
}

</mosaic_0001>

<llo_original>
// kernel: tpu_custom_call.1
$region0: #{tpu_custom_call.1}
  #allocation0 [shape = 'u32[]', space=smem, size = 0x4, offset = 0x4, fixed_abs, tag = 'smem constant byte address 0x4 - core index']
  #allocation1 [shape = 'u32[144,128]{1,0:T(1,128)}', space=vmem, size = 0x12000, scoped, tag = 'internal scratch']
  #allocation2 [shape = 'bf16[256,128]{1,0:T(8,128)(2,1)}', space=vmem, size = 0x10000, scoped, tag = 'scratch operand']
  #allocation3 [shape = 'bf16[256,128]{1,0:T(8,128)(2,1)}', space=vmem, size = 0x10000, scoped, tag = 'scratch operand']
  %s0 = inlined_call_operand.hbm [shape: bf16[256,128], index: 0, kind: input, shape index: {}]
  %s1 = inlined_call_operand.hbm [shape: bf16[256,256], index: 1, kind: input, shape index: {}]
  %s2 = inlined_call_operand.hbm [shape: bf16[256,128], index: 2, kind: input, shape index: {}]
  %s3 = inlined_call_operand.hbm [shape: bf16[128,128], index: 3, kind: input, shape index: {}]
  %s4 = inlined_call_operand.hbm [shape: bf16[128,128], index: 4, kind: input, shape index: {}]
  %s5 = inlined_call_operand.hbm [shape: f32[256,128], index: 5, kind: output, shape index: {}]
  %s6 = sld [smem:[#allocation0]]
  $region85: #{tpu_custom_call.1} parent=0
    _
  %s8 = ssub.s32 1, %s6
  %s9 = scalar_select 0, %s8, %s6
  $region1: #{tpu_custom_call.1} parent=0
    #allocation4 [shape = 'u8[65536]{0}', space=vmem, size = 0x10000, scoped, tag = 'input window, operand 0']
    #allocation5 [shape = 's32[2]{0}', space=sflag, size = 0x8, scoped, tag = 'scoped memory for tpu_custom_call.1']
    #allocation6 [shape = 's32[2]{0}', space=sflag, size = 0x8, scoped, tag = 'scoped memory for tpu_custom_call.1']
    #allocation7 [shape = 'u8[131072]{0}', space=vmem, size = 0x20000, scoped, tag = 'input window, operand 1']
    #allocation8 [shape = 's32[2]{0}', space=sflag, size = 0x8, scoped, tag = 'scoped memory for tpu_custom_call.1']
    #allocation9 [shape = 'u8[65536]{0}', space=vmem, size = 0x10000, scoped, tag = 'input window, operand 2']
    #allocation10 [shape = 'u8[32768]{0}', space=vmem, size = 0x8000, scoped, tag = 'input window, operand 3, single buffered']
    #allocation11 [shape = 's32[1]{0}', space=sflag, size = 0x4, scoped, tag = 'scoped memory for tpu_custom_call.1']
    #allocation12 [shape = 'u8[32768]{0}', space=vmem, size = 0x8000, scoped, tag = 'input window, operand 4, single buffered']
    #allocation13 [shape = 'u8[131072]{0}', space=vmem, size = 0x20000, scoped, tag = 'output window, operand 0']
    %10 = vsyncpa [#allocation5], 0
    %s11 = scalar_lea.sflag [#allocation5], 1
    %12 = vsyncpa %s11, 0
    %13 = vsyncpa [#allocation8], 0
    %s14 = scalar_lea.sflag [#allocation8], 1
    %15 = vsyncpa %s14, 0
    %16 = vsyncpa [#allocation11], 0
    %17 = vsyncpa [#allocation6], 0
    %s18 = scalar_lea.sflag [#allocation6], 1
    %19 = vsyncpa %s18, 0
    loop: start=0, step=1, limit=8
    $region2: #{tpu_custom_call.1} parent=1 // loop_pre_header
      _
    $region3: #{tpu_custom_call.1} parent=1 // loop_header
      %s21 = sphi 0, %s25
      %p22 = scmp.ge.s32.totalorder %s21, 8
      %s28 = sphi 0, %s40
      %s29 = sphi 0, %s36
      %s30 = sphi 0, %s28
      %s31 = sphi 0, %s29
      %s32 = sphi 0, %s30
      %s33 = sphi 0, %s31
      %s47 = sphi 0, %s49
      %s50 = sphi 0, %s47
      %s51 = sphi 0, %s50
      %s67 = sphi 0, %s51
      %s77 = sphi 0, %s79
      %s80 = sphi 0, %s77
      %s81 = sphi 0, %s80
      %s97 = sphi 0, %s81
      %s107 = sphi 0, %s109
      %s110 = sphi 0, %s107
      %s111 = sphi 0, %s110
      %s127 = sphi 0, %s111
      %s131 = sphi 0, %s131
      %s133 = sphi 0, %s131
      %s134 = sphi 0, %s133
      %s148 = sphi 0, %s134
      %s152 = sphi 0, %s152
      %s154 = sphi 0, %s152
      %s155 = sphi 0, %s154
      %s169 = sphi 0, %s155
      %s179 = sphi 0, %s181
      %s182 = sphi 0, %s179
      %s183 = sphi 0, %s182
      %s199 = sphi 0, %s183
    $region4: #{tpu_custom_call.1} parent=1 // loop_header_branch
      %24 = sbr.rel (%p22) target = $region8
    $region5: #{tpu_custom_call.1} parent=1 // loop_body
      %s26 = ssub.s32 %s21, 1
      %s27 = ssub.s32 %s21, 2
      %s34 = sadd.s32 1, %s29
      %p35 = scmp.ge.s32.totalorder %s34, 2
      %s36 = scalar_select %p35, 0, %s34
      %s37 = sadd.s32 1, %s28
      %s38 = scalar_select %p35, %s37, %s28
      %p39 = scmp.ge.s32.totalorder %s38, 3
      %s40 = scalar_select %p39, 0, %s38
      %p41 = scmp.eq.s32.totalorder %s28, 0
      %s42 = scalar_select %p41, %s29, 0
      %p43 = scmp.eq.s32.totalorder %s40, 0
      %s44 = scalar_select %p43, %s36, 0
      %s45 = ssub.s32 %s42, %s44
      %p46 = scmp.eq.s32.totalorder %s45, 0
      %s48 = sadd.s32 %s47, 1
      %s49 = scalar_select %p46, %s47, %s48
      %p52 = pneg %p46
      %p53 = scmp.eq.s32.totalorder %s21, 5
      %p54 = por %p52, %p53
      %p55 = scmp.ne.s32.totalorder %s47, %s50
      %p56 = scmp.eq.s32.totalorder %s21, 0
      %p57 = por %p55, %p56
      %p58 = scmp.ne.s32.totalorder %s47, %s50
      %p59 = scmp.eq.s32.totalorder %s26, 5
      %p60 = por %p58, %p59
      %p61 = scmp.ne.s32.totalorder %s50, %s51
      %p62 = scmp.eq.s32.totalorder %s26, 0
      %p63 = por %p61, %p62
      %p64 = scmp.ne.s32.totalorder %s50, %s51
      %p65 = scmp.eq.s32.totalorder %s27, 5
      %p66 = por %p64, %p65
      %p68 = scmp.ne.s32.totalorder %s51, %s67
      %p69 = scmp.eq.s32.totalorder %s27, 0
      %p70 = por %p68, %p69
      %p71 = scmp.eq.s32.totalorder %s28, 0
      %s72 = scalar_select %p71, 0, %s29
      %p73 = scmp.eq.s32.totalorder %s40, 0
      %s74 = scalar_select %p73, 0, %s36
      %s75 = ssub.s32 %s72, %s74
      %p76 = scmp.eq.s32.totalorder %s75, 0
      %s78 = sadd.s32 %s77, 1
      %s79 = scalar_select %p76, %s77, %s78
      %p82 = pneg %p76
      %p83 = scmp.eq.s32.totalorder %s21, 5
      %p84 = por %p82, %p83
      %p85 = scmp.ne.s32.totalorder %s77, %s80
      %p86 = scmp.eq.s32.totalorder %s21, 0
      %p87 = por %p85, %p86
      %p88 = scmp.ne.s32.totalorder %s77, %s80
      %p89 = scmp.eq.s32.totalorder %s26, 5
      %p90 = por %p88, %p89
      %p91 = scmp.ne.s32.totalorder %s80, %s81
      %p92 = scmp.eq.s32.totalorder %s26, 0
      %p93 = por %p91, %p92
      %p94 = scmp.ne.s32.totalorder %s80, %s81
      %p95 = scmp.eq.s32.totalorder %s27, 5
      %p96 = por %p94, %p95
      %p98 = scmp.ne.s32.totalorder %s81, %s97
      %p99 = scmp.eq.s32.totalorder %s27, 0
      %p100 = por %p98, %p99
      %p101 = scmp.eq.s32.totalorder %s28, 1
      %s102 = scalar_select %p101, %s29, 0
      %p103 = scmp.eq.s32.totalorder %s40, 1
      %s104 = scalar_select %p103, %s36, 0
      %s105 = ssub.s32 %s102, %s104
      %p106 = scmp.eq.s32.totalorder %s105, 0
      %s108 = sadd.s32 %s107, 1
      %s109 = scalar_select %p106, %s107, %s108
      %p112 = pneg %p106
      %p113 = scmp.eq.s32.totalorder %s21, 5
      %p114 = por %p112, %p113
      %p115 = scmp.ne.s32.totalorder %s107, %s110
      %p116 = scmp.eq.s32.totalorder %s21, 0
      %p117 = por %p115, %p116
      %p118 = scmp.ne.s32.totalorder %s107, %s110
      %p119 = scmp.eq.s32.totalorder %s26, 5
      %p120 = por %p118, %p119
      %p121 = scmp.ne.s32.totalorder %s110, %s111
      %p122 = scmp.eq.s32.totalorder %s26, 0
      %p123 = por %p121, %p122
      %p124 = scmp.ne.s32.totalorder %s110, %s111
      %p125 = scmp.eq.s32.totalorder %s27, 5
      %p126 = por %p124, %p125
      %p128 = scmp.ne.s32.totalorder %s111, %s127
      %p129 = scmp.eq.s32.totalorder %s27, 0
      %p130 = por %p128, %p129
      %s132 = sadd.s32 %s131, 1
      %p135 = scmp.eq.s32.totalorder %s21, 5
      %p136 = scmp.ne.s32.totalorder %s131, %s133
      %p137 = scmp.eq.s32.totalorder %s21, 0
      %p138 = por %p136, %p137
      %p139 = scmp.ne.s32.totalorder %s131, %s133
      %p140 = scmp.eq.s32.totalorder %s26, 5
      %p141 = por %p139, %p140
      %p142 = scmp.ne.s32.totalorder %s133, %s134
      %p143 = scmp.eq.s32.totalorder %s26, 0
      %p144 = por %p142, %p143
      %p145 = scmp.ne.s32.totalorder %s133, %s134
      %p146 = scmp.eq.s32.totalorder %s27, 5
      %p147 = por %p145, %p146
      %p149 = scmp.ne.s32.totalorder %s134, %s148
      %p150 = scmp.eq.s32.totalorder %s27, 0
      %p151 = por %p149, %p150
      %s153 = sadd.s32 %s152, 1
      %p156 = scmp.eq.s32.totalorder %s21, 5
      %p157 = scmp.ne.s32.totalorder %s152, %s154
      %p158 = scmp.eq.s32.totalorder %s21, 0
      %p159 = por %p157, %p158
      %p160 = scmp.ne.s32.totalorder %s152, %s154
      %p161 = scmp.eq.s32.totalorder %s26, 5
      %p162 = por %p160, %p161
      %p163 = scmp.ne.s32.totalorder %s154, %s155
      %p164 = scmp.eq.s32.totalorder %s26, 0
      %p165 = por %p163, %p164
      %p166 = scmp.ne.s32.totalorder %s154, %s155
      %p167 = scmp.eq.s32.totalorder %s27, 5
      %p168 = por %p166, %p167
      %p170 = scmp.ne.s32.totalorder %s155, %s169
      %p171 = scmp.eq.s32.totalorder %s27, 0
      %p172 = por %p170, %p171
      %p173 = scmp.eq.s32.totalorder %s28, 2
      %s174 = scalar_select %p173, %s29, 0
      %p175 = scmp.eq.s32.totalorder %s40, 2
      %s176 = scalar_select %p175, %s36, 0
      %s177 = ssub.s32 %s174, %s176
      %p178 = scmp.eq.s32.totalorder %s177, 0
      %s180 = sadd.s32 %s179, 1
      %s181 = scalar_select %p178, %s179, %s180
      %p184 = pneg %p178
      %p185 = scmp.eq.s32.totalorder %s21, 5
      %p186 = por %p184, %p185
      %p187 = scmp.ne.s32.totalorder %s179, %s182
      %p188 = scmp.eq.s32.totalorder %s21, 0
      %p189 = por %p187, %p188
      %p190 = scmp.ne.s32.totalorder %s179, %s182
      %p191 = scmp.eq.s32.totalorder %s26, 5
      %p192 = por %p190, %p191
      %p193 = scmp.ne.s32.totalorder %s182, %s183
      %p194 = scmp.eq.s32.totalorder %s26, 0
      %p195 = por %p193, %p194
      %p196 = scmp.ne.s32.totalorder %s182, %s183
      %p197 = scmp.eq.s32.totalorder %s27, 5
      %p198 = por %p196, %p197
      %p200 = scmp.ne.s32.totalorder %s183, %s199
      %p201 = scmp.eq.s32.totalorder %s27, 0
      %p202 = por %p200, %p201
      %p203 = scmp.le.s32.totalorder 1, %s21
      %p204 = scmp.lt.s32.totalorder %s21, 7
      %p205 = pnand %p203, %p204
      %p206 = pneg %p205
      // Predicated region
      $region9: #{tpu_custom_call.1} parent=5 // pred_check
        _
      $region10: #{tpu_custom_call.1} parent=5 // pred_check_branch
        %208 = sbr.rel (%p205) target = $region12
      $region11: #{tpu_custom_call.1} parent=5 // pred_region
        %s209 = ssub.s32 %s21, 1
        // Predicated region
        $region13: #{tpu_custom_call.1} parent=11 // pred_check
          %p210 = pneg %p144
        $region14: #{tpu_custom_call.1} parent=11 // pred_check_branch
          %212 = sbr.rel (%p210) target = $region16
        $region15: #{tpu_custom_call.1} parent=11 // pred_region
          %s214 = ssub.s32 1024, 1024
          %215 = vsyncadd [#allocation11], %s214
          %s216 = sshll.u32 [#allocation10], 4
          %s217 = int_to_ptr.vmem [resolvable:$true] %s216
          %222 = dma.hbm_to_vmem [thread:$0]  %s3, 1024, %s217, [#allocation11], 64, 64, 4
        $region16: #{tpu_custom_call.1} parent=11 // pred_fallthru
          _
        // Predicated region
        $region17: #{tpu_custom_call.1} parent=11 // pred_check
          %p223 = pneg %p165
        $region18: #{tpu_custom_call.1} parent=11 // pred_check_branch
          %225 = sbr.rel (%p223) target = $region20
        $region19: #{tpu_custom_call.1} parent=11 // pred_region
          %s227 = ssub.s32 1024, 1024
          %228 = vsyncadd [#allocation11], %s227
          %s229 = sshll.u32 [#allocation12], 4
          %s230 = int_to_ptr.vmem [resolvable:$true] %s229
          %235 = dma.hbm_to_vmem [thread:$0]  %s4, 1024, %s230, [#allocation11], 64, 64, 4
        $region20: #{tpu_custom_call.1} parent=11 // pred_fallthru
          _
      $region12: #{tpu_custom_call.1} parent=5 // pred_fallthru
        _
      %p236 = scmp.lt.s32.totalorder %s21, 6
      // Predicated region
      $region21: #{tpu_custom_call.1} parent=5 // pred_check
        %p237 = pneg %p236
      $region22: #{tpu_custom_call.1} parent=5 // pred_check_branch
        %239 = sbr.rel (%p237) target = $region24
      $region23: #{tpu_custom_call.1} parent=5 // pred_region
        // Predicated region
        $region25: #{tpu_custom_call.1} parent=23 // pred_check
          %p240 = pneg %p57
        $region26: #{tpu_custom_call.1} parent=23 // pred_check_branch
          %242 = sbr.rel (%p240) target = $region28
        $region27: #{tpu_custom_call.1} parent=23 // pred_region
          %s243 = sand.u32 %s47, 1
          %s244 = scalar_lea.sflag [#allocation5], %s243
          %s245 = sand.u32 %s47, 1
          %s246 = smul.addr %s245, 64
          %s247 = scalar_lea.vmem [#allocation4], %s246
          %p248 = scmp.eq.s32.totalorder %s28, 0
          %s249 = scalar_select %p248, %s29, 0
          %s250 = smul.u32 16, %s249
          %s252 = ssub.s32 1024, 1024
          %253 = vsyncadd %s244, %s252
          %s254 = smul.addr %s250, 64
          %s255 = scalar_lea.hbm %s0, %s254
          %s256 = sshll.u32 %s247, 4
          %s257 = int_to_ptr.vmem [resolvable:$true] %s256
          %262 = dma.hbm_to_vmem [thread:$0]  %s255, 1024, %s257, %s244, 64, 64, 4
        $region28: #{tpu_custom_call.1} parent=23 // pred_fallthru
          _
        // Predicated region
        $region29: #{tpu_custom_call.1} parent=23 // pred_check
          %p263 = pneg %p87
        $region30: #{tpu_custom_call.1} parent=23 // pred_check_branch
          %265 = sbr.rel (%p263) target = $region32
        $region31: #{tpu_custom_call.1} parent=23 // pred_region
          %s266 = sand.u32 %s21, 1
          %s267 = scalar_lea.sflag [#allocation8], %s266
          %s268 = sand.u32 %s77, 1
          %s269 = smul.addr %s268, 128
          %s270 = scalar_lea.vmem [#allocation7], %s269
          %p271 = scmp.eq.s32.totalorder %s28, 0
          %s272 = scalar_select %p271, 0, %s29
          %s273 = smul.u32 16, %s272
          %s275 = ssub.s32 2048, 2048
          %276 = vsyncadd %s267, %s275
          %s277 = smul.addr %s273, 2
          %s278 = smul.addr %s277, 64
          %s279 = scalar_lea.hbm %s1, %s278
          %s280 = sshll.u32 %s270, 4
          %s281 = int_to_ptr.vmem [resolvable:$true] %s280
          %286 = dma.hbm_to_vmem [thread:$0]  %s279, 2048, %s281, %s267, 128, 128, 8
        $region32: #{tpu_custom_call.1} parent=23 // pred_fallthru
          _
        // Predicated region
        $region33: #{tpu_custom_call.1} parent=23 // pred_check
          %p287 = pneg %p117
        $region34: #{tpu_custom_call.1} parent=23 // pred_check_branch
          %289 = sbr.rel (%p287) target = $region36
        $region35: #{tpu_custom_call.1} parent=23 // pred_region
          %s290 = sand.u32 %s21, 1
          %s291 = scalar_lea.sflag [#allocation8], %s290
          %s292 = sand.u32 %s107, 1
          %s293 = smul.addr %s292, 64
          %s294 = scalar_lea.vmem [#allocation9], %s293
          %p295 = scmp.eq.s32.totalorder %s28, 1
          %s296 = scalar_select %p295, %s29, 0
          %s297 = smul.u32 16, %s296
          %s299 = ssub.s32 1024, 1024
          %300 = vsyncadd %s291, %s299
          %s301 = smul.addr %s297, 64
          %s302 = scalar_lea.hbm %s2, %s301
          %s303 = sshll.u32 %s294, 4
          %s304 = int_to_ptr.vmem [resolvable:$true] %s303
          %309 = dma.hbm_to_vmem [thread:$0]  %s302, 1024, %s304, %s291, 64, 64, 4
        $region36: #{tpu_custom_call.1} parent=23 // pred_fallthru
          _
      $region24: #{tpu_custom_call.1} parent=5 // pred_fallthru
        _
      %p310 = scmp.le.s32.totalorder 1, %s21
      %p311 = scmp.lt.s32.totalorder %s21, 7
      %p312 = pnand %p310, %p311
      %p313 = pneg %p312
      // Predicated region
      $region37: #{tpu_custom_call.1} parent=5 // pred_check
        _
      $region38: #{tpu_custom_call.1} parent=5 // pred_check_branch
        %315 = sbr.rel (%p312) target = $region40
      $region39: #{tpu_custom_call.1} parent=5 // pred_region
        %s316 = ssub.s32 %s21, 1
        %s317 = sand.u32 %s50, 1
        %s318 = scalar_lea.sflag [#allocation5], %s317
        %s319 = sand.u32 %s50, 1
        %s320 = smul.addr %s319, 64
        %s321 = scalar_lea.vmem [#allocation4], %s320
        // Predicated region
        $region41: #{tpu_custom_call.1} parent=39 // pred_check
          %p322 = pneg %p63
        $region42: #{tpu_custom_call.1} parent=39 // pred_check_branch
          %324 = sbr.rel (%p322) target = $region44
        $region43: #{tpu_custom_call.1} parent=39 // pred_region
          %325 = dma.done %s318, 1024
        $region44: #{tpu_custom_call.1} parent=39 // pred_fallthru
          _
        %s326 = sand.u32 %s26, 1
        %s327 = scalar_lea.sflag [#allocation8], %s326
        %s328 = sand.u32 %s80, 1
        %s329 = smul.addr %s328, 128
        %s330 = scalar_lea.vmem [#allocation7], %s329
        // Predicated region
        $region45: #{tpu_custom_call.1} parent=39 // pred_check
          %p331 = pneg %p93
        $region46: #{tpu_custom_call.1} parent=39 // pred_check_branch
          %333 = sbr.rel (%p331) target = $region48
        $region47: #{tpu_custom_call.1} parent=39 // pred_region
          %334 = dma.done %s327, 2048
        $region48: #{tpu_custom_call.1} parent=39 // pred_fallthru
          _
        %s335 = sand.u32 %s26, 1
        %s336 = scalar_lea.sflag [#allocation8], %s335
        %s337 = sand.u32 %s110, 1
        %s338 = smul.addr %s337, 64
        %s339 = scalar_lea.vmem [#allocation9], %s338
        // Predicated region
        $region49: #{tpu_custom_call.1} parent=39 // pred_check
          %p340 = pneg %p123
        $region50: #{tpu_custom_call.1} parent=39 // pred_check_branch
          %342 = sbr.rel (%p340) target = $region52
        $region51: #{tpu_custom_call.1} parent=39 // pred_region
          %343 = dma.done %s336, 1024
        $region52: #{tpu_custom_call.1} parent=39 // pred_fallthru
          _
        // Predicated region
        $region53: #{tpu_custom_call.1} parent=39 // pred_check
          %p344 = pneg %p144
        $region54: #{tpu_custom_call.1} parent=39 // pred_check_branch
          %346 = sbr.rel (%p344) target = $region56
        $region55: #{tpu_custom_call.1} parent=39 // pred_region
          %347 = dma.done [#allocation11], 1024
        $region56: #{tpu_custom_call.1} parent=39 // pred_fallthru
          _
        // Predicated region
        $region57: #{tpu_custom_call.1} parent=39 // pred_check
          %p348 = pneg %p165
        $region58: #{tpu_custom_call.1} parent=39 // pred_check_branch
          %350 = sbr.rel (%p348) target = $region60
        $region59: #{tpu_custom_call.1} parent=39 // pred_region
          %351 = dma.done [#allocation11], 1024
        $region60: #{tpu_custom_call.1} parent=39 // pred_fallthru
          _
        %s352 = sand.u32 %s50, 1
        %s353 = scalar_lea.sflag [#allocation5], %s352
        %s354 = sand.u32 %s50, 1
        %s355 = smul.addr %s354, 64
        %s356 = scalar_lea.vmem [#allocation4], %s355
        %p357 = pneg %p63
        %p358 = pneg %p60
        %s359 = sand.u32 %s26, 1
        %s360 = scalar_lea.sflag [#allocation8], %s359
        %s361 = sand.u32 %s80, 1
        %s362 = smul.addr %s361, 128
        %s363 = scalar_lea.vmem [#allocation7], %s362
        %p364 = pneg %p93
        %p365 = pneg %p90
        %s366 = sand.u32 %s26, 1
        %s367 = scalar_lea.sflag [#allocation8], %s366
        %s368 = sand.u32 %s110, 1
        %s369 = smul.addr %s368, 64
        %s370 = scalar_lea.vmem [#allocation9], %s369
        %p371 = pneg %p123
        %p372 = pneg %p120
        %p373 = pneg %p144
        %p374 = pneg %p141
        %p375 = pneg %p165
        %p376 = pneg %p162
        %p377 = pneg %p195
        %p378 = pneg %p192
        %s379 = sand.u32 %s182, 1
        %s380 = scalar_lea.sflag [#allocation6], %s379
        %s381 = sand.u32 %s182, 1
        %s382 = smul.addr %s381, 128
        %s383 = scalar_lea.vmem [#allocation13], %s382
        %p384 = scmp.eq.s32.totalorder %s30, 0
        %s385 = scalar_select %p384, %s31, 0
        %s386 = smul.u32 16, %s385
        %p387 = scmp.eq.s32.totalorder %s30, 0
        %s388 = scalar_select %p387, 0, %s31
        %s389 = smul.u32 16, %s388
        %p390 = scmp.eq.s32.totalorder %s30, 1
        %s391 = scalar_select %p390, %s31, 0
        %s392 = smul.u32 16, %s391
        %p393 = scmp.eq.s32.totalorder %s30, 2
        %s394 = scalar_select %p393, %s31, 0
        %s395 = smul.u32 16, %s394
        %s397 = smul.u32 %s31, 128
        %p398 = scmp.eq.s32.totalorder %s30, 0
        // Predicated region
        $region61: #{tpu_custom_call.1} parent=39 // pred_check
          %p399 = pneg %p398
        $region62: #{tpu_custom_call.1} parent=39 // pred_check_branch
          %401 = sbr.rel (%p399) target = $region64
        $region63: #{tpu_custom_call.1} parent=39 // pred_region
          %v402 = vld [vmem:[%s321] sm:$0xf]
          %v403 = vld [vmem:[%s321 + $0x4] sm:$0xf]
          %v404 = vld [vmem:[%s321 + $0x8] sm:$0xf]
          %v405 = vld [vmem:[%s321 + $0xc] sm:$0xf]
          %v406 = vld [vmem:[%s321 + $0x10] sm:$0xf]
          %v407 = vld [vmem:[%s321 + $0x14] sm:$0xf]
          %v408 = vld [vmem:[%s321 + $0x18] sm:$0xf]
          %v409 = vld [vmem:[%s321 + $0x1c] sm:$0xf]
          %v410 = vld [vmem:[%s321 + $0x20] sm:$0xf]
          %v411 = vld [vmem:[%s321 + $0x24] sm:$0xf]
          %v412 = vld [vmem:[%s321 + $0x28] sm:$0xf]
          %v413 = vld [vmem:[%s321 + $0x2c] sm:$0xf]
          %v414 = vld [vmem:[%s321 + $0x30] sm:$0xf]
          %v415 = vld [vmem:[%s321 + $0x34] sm:$0xf]
          %v416 = vld [vmem:[%s321 + $0x38] sm:$0xf]
          %v417 = vld [vmem:[%s321 + $0x3c] sm:$0xf]
          %v418 = vld [vmem:[#allocation10] sm:$0xf]
          %v419 = vld [vmem:[#allocation10 + $0x4] sm:$0xf]
          %v420 = vld [vmem:[#allocation10 + $0x8] sm:$0xf]
          %v421 = vld [vmem:[#allocation10 + $0xc] sm:$0xf]
          %v422 = vld [vmem:[#allocation10 + $0x10] sm:$0xf]
          %v423 = vld [vmem:[#allocation10 + $0x14] sm:$0xf]
          %v424 = vld [vmem:[#allocation10 + $0x18] sm:$0xf]
          %v425 = vld [vmem:[#allocation10 + $0x1c] sm:$0xf]
          %v426 = vld [vmem:[#allocation10 + $0x20] sm:$0xf]
          %v427 = vld [vmem:[#allocation10 + $0x24] sm:$0xf]
          %v428 = vld [vmem:[#allocation10 + $0x28] sm:$0xf]
          %v429 = vld [vmem:[#allocation10 + $0x2c] sm:$0xf]
          %v430 = vld [vmem:[#allocation10 + $0x30] sm:$0xf]
          %v431 = vld [vmem:[#allocation10 + $0x34] sm:$0xf]
          %v432 = vld [vmem:[#allocation10 + $0x38] sm:$0xf]
          %v433 = vld [vmem:[#allocation10 + $0x3c] sm:$0xf]
          %v450 = vunpack.c.l.b16 %v402
          %v451 = vunpack.c.l.b16 %v403
          %v452 = vunpack.c.l.b16 %v404
          %v453 = vunpack.c.l.b16 %v405
          %v454 = vunpack.c.l.b16 %v406
          %v455 = vunpack.c.l.b16 %v407
          %v456 = vunpack.c.l.b16 %v408
          %v457 = vunpack.c.l.b16 %v409
          %v458 = vunpack.c.l.b16 %v410
          %v459 = vunpack.c.l.b16 %v411
          %v460 = vunpack.c.l.b16 %v412
          %v461 = vunpack.c.l.b16 %v413
          %v462 = vunpack.c.l.b16 %v414
          %v463 = vunpack.c.l.b16 %v415
          %v464 = vunpack.c.l.b16 %v416
          %v465 = vunpack.c.l.b16 %v417
          %v466 = vpack.c.b16 %v451, %v450
          %v467 = vpack.c.b16 %v453, %v452
          %v468 = vpack.c.b16 %v455, %v454
          %v469 = vpack.c.b16 %v457, %v456
          %v470 = vpack.c.b16 %v459, %v458
          %v471 = vpack.c.b16 %v461, %v460
          %v472 = vpack.c.b16 %v463, %v462
          %v473 = vpack.c.b16 %v465, %v464
          %v498 = vunpack.c.l.b16 %v418
          %v499 = vunpack.c.l.b16 %v419
          %v500 = vunpack.c.l.b16 %v420
          %v501 = vunpack.c.l.b16 %v421
          %v502 = vunpack.c.l.b16 %v422
          %v503 = vunpack.c.l.b16 %v423
          %v504 = vunpack.c.l.b16 %v424
          %v505 = vunpack.c.l.b16 %v425
          %v506 = vunpack.c.l.b16 %v426
          %v507 = vunpack.c.l.b16 %v427
          %v508 = vunpack.c.l.b16 %v428
          %v509 = vunpack.c.l.b16 %v429
          %v510 = vunpack.c.l.b16 %v430
          %v511 = vunpack.c.l.b16 %v431
          %v512 = vunpack.c.l.b16 %v432
          %v513 = vunpack.c.l.b16 %v433
          %v514 = vpack.c.b16 %v499, %v498
          %v515 = vpack.c.b16 %v501, %v500
          %v516 = vpack.c.b16 %v503, %v502
          %v517 = vpack.c.b16 %v505, %v504
          %v518 = vpack.c.b16 %v507, %v506
          %v519 = vpack.c.b16 %v509, %v508
          %v520 = vpack.c.b16 %v511, %v510
          %v521 = vpack.c.b16 %v513, %v512
          %530 = vmatprep.subr.bf16.mxu0 0
          %531 = vmatpush1.bf16.msra.mxu0 %v521
          %532 = vmatprep.subr.bf16.mxu0 0
          %533 = vmatpush1.bf16.msra.mxu0 %v520
          %534 = vmatprep.subr.bf16.mxu0 0
          %535 = vmatpush1.bf16.msra.mxu0 %v519
          %536 = vmatprep.subr.bf16.mxu0 0
          %537 = vmatpush1.bf16.msra.mxu0 %v518
          %538 = vmatprep.subr.bf16.mxu0 0
          %539 = vmatpush1.bf16.msra.mxu0 %v517
          %540 = vmatprep.subr.bf16.mxu0 0
          %541 = vmatpush1.bf16.msra.mxu0 %v516
          %542 = vmatprep.subr.bf16.mxu0 0
          %543 = vmatpush1.bf16.msra.mxu0 %v515
          %544 = vmatprep.subr.bf16.mxu0 0
          %545 = vmatpush1.bf16.msra.mxu0 %v514
          %546 = vmatprep.subr.bf16.mxu0 0
          %547 = vmatpush2.bf16.msra.mxu0 0
          %548 = vmatprep.subr.bf16.mxu0 0
          %549 = vmatpush2.bf16.msra.mxu0 0
          %550 = vmatprep.subr.bf16.mxu0 0
          %551 = vmatpush2.bf16.msra.mxu0 0
          %552 = vmatprep.subr.bf16.mxu0 0
          %553 = vmatpush2.bf16.msra.mxu0 0
          %554 = vmatprep.subr.bf16.mxu0 0
          %555 = vmatpush2.bf16.msra.mxu0 0
          %556 = vmatprep.subr.bf16.mxu0 0
          %557 = vmatpush2.bf16.msra.mxu0 0
          %558 = vmatprep.subr.bf16.mxu0 0
          %559 = vmatpush2.bf16.msra.mxu0 0
          %560 = vmatprep.subr.bf16.mxu0 0
          %561 = vmatpush2.bf16.msra.mxu0 0
          %562 = vmatprep.mubr.bf16.mxu0 0
          %563 = vmatmul.mubr.bf16.gmra.mxu0 %v466
          %v564 = vpop.f32.mrf.mxu0
          %v565 = vadd.f32 0.0, %v564
          %v566 = vpop.f32.mrf.mxu0
          %v567 = vpop.f32.mrf.mxu0
          %v568 = vadd.f32 0.0, %v567
          %v569 = vpop.f32.mrf.mxu0
          %570 = vmatprep.mubr.bf16.mxu0 0
          %571 = vmatmul.mubr.bf16.gmra.mxu0 %v467
          %v572 = vpop.f32.mrf.mxu0
          %v573 = vadd.f32 0.0, %v572
          %v574 = vpop.f32.mrf.mxu0
          %v575 = vpop.f32.mrf.mxu0
          %v576 = vadd.f32 0.0, %v575
          %v577 = vpop.f32.mrf.mxu0
          %578 = vmatprep.mubr.bf16.mxu0 0
          %579 = vmatmul.mubr.bf16.gmra.mxu0 %v468
          %v580 = vpop.f32.mrf.mxu0
          %v581 = vadd.f32 0.0, %v580
          %v582 = vpop.f32.mrf.mxu0
          %v583 = vpop.f32.mrf.mxu0
          %v584 = vadd.f32 0.0, %v583
          %v585 = vpop.f32.mrf.mxu0
          %586 = vmatprep.mubr.bf16.mxu0 0
          %587 = vmatmul.mubr.bf16.gmra.mxu0 %v469
          %v588 = vpop.f32.mrf.mxu0
          %v589 = vadd.f32 0.0, %v588
          %v590 = vpop.f32.mrf.mxu0
          %v591 = vpop.f32.mrf.mxu0
          %v592 = vadd.f32 0.0, %v591
          %v593 = vpop.f32.mrf.mxu0
          %594 = vmatprep.mubr.bf16.mxu0 0
          %595 = vmatmul.mubr.bf16.gmra.mxu0 %v470
          %v596 = vpop.f32.mrf.mxu0
          %v597 = vadd.f32 0.0, %v596
          %v598 = vpop.f32.mrf.mxu0
          %v599 = vpop.f32.mrf.mxu0
          %v600 = vadd.f32 0.0, %v599
          %v601 = vpop.f32.mrf.mxu0
          %602 = vmatprep.mubr.bf16.mxu0 0
          %603 = vmatmul.mubr.bf16.gmra.mxu0 %v471
          %v604 = vpop.f32.mrf.mxu0
          %v605 = vadd.f32 0.0, %v604
          %v606 = vpop.f32.mrf.mxu0
          %v607 = vpop.f32.mrf.mxu0
          %v608 = vadd.f32 0.0, %v607
          %v609 = vpop.f32.mrf.mxu0
          %610 = vmatprep.mubr.bf16.mxu0 0
          %611 = vmatmul.mubr.bf16.gmra.mxu0 %v472
          %v612 = vpop.f32.mrf.mxu0
          %v613 = vadd.f32 0.0, %v612
          %v614 = vpop.f32.mrf.mxu0
          %v615 = vpop.f32.mrf.mxu0
          %v616 = vadd.f32 0.0, %v615
          %v617 = vpop.f32.mrf.mxu0
          %618 = vmatprep.mubr.bf16.mxu0 0
          %619 = vmatmul.mubr.bf16.gmra.mxu0 %v473
          %v620 = vpop.f32.mrf.mxu0
          %v621 = vadd.f32 0.0, %v620
          %v622 = vpop.f32.mrf.mxu0
          %v623 = vpop.f32.mrf.mxu0
          %v624 = vadd.f32 0.0, %v623
          %v625 = vpop.f32.mrf.mxu0
          %626 = vdwg.mxu0
          %v627 = vpack.c.bf16 %v568, %v565
          %v628 = vpack.c.bf16 %v576, %v573
          %v629 = vpack.c.bf16 %v584, %v581
          %v630 = vpack.c.bf16 %v592, %v589
          %v631 = vpack.c.bf16 %v600, %v597
          %v632 = vpack.c.bf16 %v608, %v605
          %v633 = vpack.c.bf16 %v616, %v613
          %v634 = vpack.c.bf16 %v624, %v621
          %v643 = vunpack.c.l.b16 %v627
          %v644 = vunpack.c.h.b16 %v627
          %v645 = vunpack.c.l.b16 %v628
          %v646 = vunpack.c.h.b16 %v628
          %v647 = vunpack.c.l.b16 %v629
          %v648 = vunpack.c.h.b16 %v629
          %v649 = vunpack.c.l.b16 %v630
          %v650 = vunpack.c.h.b16 %v630
          %v651 = vunpack.c.l.b16 %v631
          %v652 = vunpack.c.h.b16 %v631
          %v653 = vunpack.c.l.b16 %v632
          %v654 = vunpack.c.h.b16 %v632
          %v655 = vunpack.c.l.b16 %v633
          %v656 = vunpack.c.h.b16 %v633
          %v657 = vunpack.c.l.b16 %v634
          %v658 = vunpack.c.h.b16 %v634
          %v659 = vpack.c.b16 %v643, %v643
          %v660 = vpack.c.b16 %v644, %v644
          %v661 = vpack.c.b16 %v645, %v645
          %v662 = vpack.c.b16 %v646, %v646
          %v663 = vpack.c.b16 %v647, %v647
          %v664 = vpack.c.b16 %v648, %v648
          %v665 = vpack.c.b16 %v649, %v649
          %v666 = vpack.c.b16 %v650, %v650
          %v667 = vpack.c.b16 %v651, %v651
          %v668 = vpack.c.b16 %v652, %v652
          %v669 = vpack.c.b16 %v653, %v653
          %v670 = vpack.c.b16 %v654, %v654
          %v671 = vpack.c.b16 %v655, %v655
          %v672 = vpack.c.b16 %v656, %v656
          %v673 = vpack.c.b16 %v657, %v657
          %v674 = vpack.c.b16 %v658, %v658
          %s691 = sshra.s32 %s397, 3
          %s692 = sand.u32 %s397, 7
          %s693 = smul.addr %s691, 4
          %s694 = scalar_lea.vmem [#allocation2], %s693
          %695 = vst [vmem:[%s694] sm:$0xf] %v659
          %696 = vst [vmem:[%s694 + $0x4] sm:$0xf] %v660
          %697 = vst [vmem:[%s694 + $0x8] sm:$0xf] %v661
          %698 = vst [vmem:[%s694 + $0xc] sm:$0xf] %v662
          %699 = vst [vmem:[%s694 + $0x10] sm:$0xf] %v663
          %700 = vst [vmem:[%s694 + $0x14] sm:$0xf] %v664
          %701 = vst [vmem:[%s694 + $0x18] sm:$0xf] %v665
          %702 = vst [vmem:[%s694 + $0x1c] sm:$0xf] %v666
          %703 = vst [vmem:[%s694 + $0x20] sm:$0xf] %v667
          %704 = vst [vmem:[%s694 + $0x24] sm:$0xf] %v668
          %705 = vst [vmem:[%s694 + $0x28] sm:$0xf] %v669
          %706 = vst [vmem:[%s694 + $0x2c] sm:$0xf] %v670
          %707 = vst [vmem:[%s694 + $0x30] sm:$0xf] %v671
          %708 = vst [vmem:[%s694 + $0x34] sm:$0xf] %v672
          %709 = vst [vmem:[%s694 + $0x38] sm:$0xf] %v673
          %710 = vst [vmem:[%s694 + $0x3c] sm:$0xf] %v674
        $region64: #{tpu_custom_call.1} parent=39 // pred_fallthru
          _
        %p711 = scmp.eq.s32.totalorder %s30, 1
        // Predicated region
        $region65: #{tpu_custom_call.1} parent=39 // pred_check
          %p712 = pneg %p711
        $region66: #{tpu_custom_call.1} parent=39 // pred_check_branch
          %714 = sbr.rel (%p712) target = $region68
        $region67: #{tpu_custom_call.1} parent=39 // pred_region
          %v715 = vld [vmem:[%s330] sm:$0xff]
          %v716 = vld [vmem:[%s330 + $0x8] sm:$0xff]
          %v717 = vld [vmem:[%s330 + $0x10] sm:$0xff]
          %v718 = vld [vmem:[%s330 + $0x18] sm:$0xff]
          %v719 = vld [vmem:[%s330 + $0x20] sm:$0xff]
          %v720 = vld [vmem:[%s330 + $0x28] sm:$0xff]
          %v721 = vld [vmem:[%s330 + $0x30] sm:$0xff]
          %v722 = vld [vmem:[%s330 + $0x38] sm:$0xff]
          %v723 = vld [vmem:[%s330 + $0x40] sm:$0xff]
          %v724 = vld [vmem:[%s330 + $0x48] sm:$0xff]
          %v725 = vld [vmem:[%s330 + $0x50] sm:$0xff]
          %v726 = vld [vmem:[%s330 + $0x58] sm:$0xff]
          %v727 = vld [vmem:[%s330 + $0x60] sm:$0xff]
          %v728 = vld [vmem:[%s330 + $0x68] sm:$0xff]
          %v729 = vld [vmem:[%s330 + $0x70] sm:$0xff]
          %v730 = vld [vmem:[%s330 + $0x78] sm:$0xff]
          %v731 = vld [vmem:[#allocation2] sm:$0xf]
          %v732 = vld [vmem:[#allocation2 + $0x4] sm:$0xf]
          %v733 = vld [vmem:[#allocation2 + $0x8] sm:$0xf]
          %v734 = vld [vmem:[#allocation2 + $0xc] sm:$0xf]
          %v735 = vld [vmem:[#allocation2 + $0x10] sm:$0xf]
          %v736 = vld [vmem:[#allocation2 + $0x14] sm:$0xf]
          %v737 = vld [vmem:[#allocation2 + $0x18] sm:$0xf]
          %v738 = vld [vmem:[#allocation2 + $0x1c] sm:$0xf]
          %v739 = vld [vmem:[#allocation2 + $0x20] sm:$0xf]
          %v740 = vld [vmem:[#allocation2 + $0x24] sm:$0xf]
          %v741 = vld [vmem:[#allocation2 + $0x28] sm:$0xf]
          %v742 = vld [vmem:[#allocation2 + $0x2c] sm:$0xf]
          %v743 = vld [vmem:[#allocation2 + $0x30] sm:$0xf]
          %v744 = vld [vmem:[#allocation2 + $0x34] sm:$0xf]
          %v745 = vld [vmem:[#allocation2 + $0x38] sm:$0xf]
          %v746 = vld [vmem:[#allocation2 + $0x3c] sm:$0xf]
          %v747 = vld [vmem:[#allocation2 + $0x40] sm:$0xf]
          %v748 = vld [vmem:[#allocation2 + $0x44] sm:$0xf]
          %v749 = vld [vmem:[#allocation2 + $0x48] sm:$0xf]
          %v750 = vld [vmem:[#allocation2 + $0x4c] sm:$0xf]
          %v751 = vld [vmem:[#allocation2 + $0x50] sm:$0xf]
          %v752 = vld [vmem:[#allocation2 + $0x54] sm:$0xf]
          %v753 = vld [vmem:[#allocation2 + $0x58] sm:$0xf]
          %v754 = vld [vmem:[#allocation2 + $0x5c] sm:$0xf]
          %v755 = vld [vmem:[#allocation2 + $0x60] sm:$0xf]
          %v756 = vld [vmem:[#allocation2 + $0x64] sm:$0xf]
          %v757 = vld [vmem:[#allocation2 + $0x68] sm:$0xf]
          %v758 = vld [vmem:[#allocation2 + $0x6c] sm:$0xf]
          %v759 = vld [vmem:[#allocation2 + $0x70] sm:$0xf]
          %v760 = vld [vmem:[#allocation2 + $0x74] sm:$0xf]
          %v761 = vld [vmem:[#allocation2 + $0x78] sm:$0xf]
          %v762 = vld [vmem:[#allocation2 + $0x7c] sm:$0xf]
          %v779 = vunpack.c.l.b16 %v715
          %v780 = vunpack.c.h.b16 %v715
          %v781 = vunpack.c.l.b16 %v716
          %v782 = vunpack.c.h.b16 %v716
          %v783 = vunpack.c.l.b16 %v717
          %v784 = vunpack.c.h.b16 %v717
          %v785 = vunpack.c.l.b16 %v718
          %v786 = vunpack.c.h.b16 %v718
          %v787 = vunpack.c.l.b16 %v719
          %v788 = vunpack.c.h.b16 %v719
          %v789 = vunpack.c.l.b16 %v720
          %v790 = vunpack.c.h.b16 %v720
          %v791 = vunpack.c.l.b16 %v721
          %v792 = vunpack.c.h.b16 %v721
          %v793 = vunpack.c.l.b16 %v722
          %v794 = vunpack.c.h.b16 %v722
          %v795 = vunpack.c.l.b16 %v723
          %v796 = vunpack.c.h.b16 %v723
          %v797 = vunpack.c.l.b16 %v724
          %v798 = vunpack.c.h.b16 %v724
          %v799 = vunpack.c.l.b16 %v725
          %v800 = vunpack.c.h.b16 %v725
          %v801 = vunpack.c.l.b16 %v726
          %v802 = vunpack.c.h.b16 %v726
          %v803 = vunpack.c.l.b16 %v727
          %v804 = vunpack.c.h.b16 %v727
          %v805 = vunpack.c.l.b16 %v728
          %v806 = vunpack.c.h.b16 %v728
          %v807 = vunpack.c.l.b16 %v729
          %v808 = vunpack.c.h.b16 %v729
          %v809 = vunpack.c.l.b16 %v730
          %v810 = vunpack.c.h.b16 %v730
          %v811 = vpack.c.b16 %v781, %v779
          %v812 = vpack.c.b16 %v782, %v780
          %v813 = vpack.c.b16 %v785, %v783
          %v814 = vpack.c.b16 %v786, %v784
          %v815 = vpack.c.b16 %v789, %v787
          %v816 = vpack.c.b16 %v790, %v788
          %v817 = vpack.c.b16 %v793, %v791
          %v818 = vpack.c.b16 %v794, %v792
          %v819 = vpack.c.b16 %v797, %v795
          %v820 = vpack.c.b16 %v798, %v796
          %v821 = vpack.c.b16 %v801, %v799
          %v822 = vpack.c.b16 %v802, %v800
          %v823 = vpack.c.b16 %v805, %v803
          %v824 = vpack.c.b16 %v806, %v804
          %v825 = vpack.c.b16 %v809, %v807
          %v826 = vpack.c.b16 %v810, %v808
          %v875 = vunpack.c.l.b16 %v731
          %v876 = vunpack.c.l.b16 %v732
          %v877 = vunpack.c.l.b16 %v733
          %v878 = vunpack.c.l.b16 %v734
          %v879 = vunpack.c.l.b16 %v735
          %v880 = vunpack.c.l.b16 %v736
          %v881 = vunpack.c.l.b16 %v737
          %v882 = vunpack.c.l.b16 %v738
          %v883 = vunpack.c.l.b16 %v739
          %v884 = vunpack.c.l.b16 %v740
          %v885 = vunpack.c.l.b16 %v741
          %v886 = vunpack.c.l.b16 %v742
          %v887 = vunpack.c.l.b16 %v743
          %v888 = vunpack.c.l.b16 %v744
          %v889 = vunpack.c.l.b16 %v745
          %v890 = vunpack.c.l.b16 %v746
          %v891 = vunpack.c.l.b16 %v747
          %v892 = vunpack.c.l.b16 %v748
          %v893 = vunpack.c.l.b16 %v749
          %v894 = vunpack.c.l.b16 %v750
          %v895 = vunpack.c.l.b16 %v751
          %v896 = vunpack.c.l.b16 %v752
          %v897 = vunpack.c.l.b16 %v753
          %v898 = vunpack.c.l.b16 %v754
          %v899 = vunpack.c.l.b16 %v755
          %v900 = vunpack.c.l.b16 %v756
          %v901 = vunpack.c.l.b16 %v757
          %v902 = vunpack.c.l.b16 %v758
          %v903 = vunpack.c.l.b16 %v759
          %v904 = vunpack.c.l.b16 %v760
          %v905 = vunpack.c.l.b16 %v761
          %v906 = vunpack.c.l.b16 %v762
          %v907 = vpack.c.b16 %v876, %v875
          %v908 = vpack.c.b16 %v878, %v877
          %v909 = vpack.c.b16 %v880, %v879
          %v910 = vpack.c.b16 %v882, %v881
          %v911 = vpack.c.b16 %v884, %v883
          %v912 = vpack.c.b16 %v886, %v885
          %v913 = vpack.c.b16 %v888, %v887
          %v914 = vpack.c.b16 %v890, %v889
          %v915 = vpack.c.b16 %v892, %v891
          %v916 = vpack.c.b16 %v894, %v893
          %v917 = vpack.c.b16 %v896, %v895
          %v918 = vpack.c.b16 %v898, %v897
          %v919 = vpack.c.b16 %v900, %v899
          %v920 = vpack.c.b16 %v902, %v901
          %v921 = vpack.c.b16 %v904, %v903
          %v922 = vpack.c.b16 %v906, %v905
          %939 = vmatprep.subr.bf16.mxu0 0
          %940 = vmatpush1.bf16.msra.mxu0 %v914
          %941 = vmatprep.subr.bf16.mxu0 0
          %942 = vmatpush1.bf16.msra.mxu0 %v913
          %943 = vmatprep.subr.bf16.mxu0 0
          %944 = vmatpush1.bf16.msra.mxu0 %v912
          %945 = vmatprep.subr.bf16.mxu0 0
          %946 = vmatpush1.bf16.msra.mxu0 %v911
          %947 = vmatprep.subr.bf16.mxu0 0
          %948 = vmatpush1.bf16.msra.mxu0 %v910
          %949 = vmatprep.subr.bf16.mxu0 0
          %950 = vmatpush1.bf16.msra.mxu0 %v909
          %951 = vmatprep.subr.bf16.mxu0 0
          %952 = vmatpush1.bf16.msra.mxu0 %v908
          %953 = vmatprep.subr.bf16.mxu0 0
          %954 = vmatpush1.bf16.msra.mxu0 %v907
          %955 = vmatprep.subr.bf16.mxu0 0
          %956 = vmatpush2.bf16.msra.mxu0 %v922
          %957 = vmatprep.subr.bf16.mxu0 0
          %958 = vmatpush2.bf16.msra.mxu0 %v921
          %959 = vmatprep.subr.bf16.mxu0 0
          %960 = vmatpush2.bf16.msra.mxu0 %v920
          %961 = vmatprep.subr.bf16.mxu0 0
          %962 = vmatpush2.bf16.msra.mxu0 %v919
          %963 = vmatprep.subr.bf16.mxu0 0
          %964 = vmatpush2.bf16.msra.mxu0 %v918
          %965 = vmatprep.subr.bf16.mxu0 0
          %966 = vmatpush2.bf16.msra.mxu0 %v917
          %967 = vmatprep.subr.bf16.mxu0 0
          %968 = vmatpush2.bf16.msra.mxu0 %v916
          %969 = vmatprep.subr.bf16.mxu0 0
          %970 = vmatpush2.bf16.msra.mxu0 %v915
          %971 = vmatprep.mubr.bf16.mxu0 %v812
          %972 = vmatmul.mubr.bf16.gmra.mxu0 %v811
          %v973 = vpop.f32.mrf.mxu0
          %v974 = vadd.f32 0.0, %v973
          %v975 = vpop.f32.mrf.mxu0
          %v976 = vpop.f32.mrf.mxu0
          %v977 = vadd.f32 0.0, %v976
          %v978 = vpop.f32.mrf.mxu0
          %979 = vmatprep.mubr.bf16.mxu0 %v814
          %980 = vmatmul.mubr.bf16.gmra.mxu0 %v813
          %v981 = vpop.f32.mrf.mxu0
          %v982 = vadd.f32 0.0, %v981
          %v983 = vpop.f32.mrf.mxu0
          %v984 = vpop.f32.mrf.mxu0
          %v985 = vadd.f32 0.0, %v984
          %v986 = vpop.f32.mrf.mxu0
          %987 = vmatprep.mubr.bf16.mxu0 %v816
          %988 = vmatmul.mubr.bf16.gmra.mxu0 %v815
          %v989 = vpop.f32.mrf.mxu0
          %v990 = vadd.f32 0.0, %v989
          %v991 = vpop.f32.mrf.mxu0
          %v992 = vpop.f32.mrf.mxu0
          %v993 = vadd.f32 0.0, %v992
          %v994 = vpop.f32.mrf.mxu0
          %995 = vmatprep.mubr.bf16.mxu0 %v818
          %996 = vmatmul.mubr.bf16.gmra.mxu0 %v817
          %v997 = vpop.f32.mrf.mxu0
          %v998 = vadd.f32 0.0, %v997
          %v999 = vpop.f32.mrf.mxu0
          %v1000 = vpop.f32.mrf.mxu0
          %v1001 = vadd.f32 0.0, %v1000
          %v1002 = vpop.f32.mrf.mxu0
          %1003 = vmatprep.mubr.bf16.mxu0 %v820
          %1004 = vmatmul.mubr.bf16.gmra.mxu0 %v819
          %v1005 = vpop.f32.mrf.mxu0
          %v1006 = vadd.f32 0.0, %v1005
          %v1007 = vpop.f32.mrf.mxu0
          %v1008 = vpop.f32.mrf.mxu0
          %v1009 = vadd.f32 0.0, %v1008
          %v1010 = vpop.f32.mrf.mxu0
          %1011 = vmatprep.mubr.bf16.mxu0 %v822
          %1012 = vmatmul.mubr.bf16.gmra.mxu0 %v821
          %v1013 = vpop.f32.mrf.mxu0
          %v1014 = vadd.f32 0.0, %v1013
          %v1015 = vpop.f32.mrf.mxu0
          %v1016 = vpop.f32.mrf.mxu0
          %v1017 = vadd.f32 0.0, %v1016
          %v1018 = vpop.f32.mrf.mxu0
          %1019 = vmatprep.mubr.bf16.mxu0 %v824
          %1020 = vmatmul.mubr.bf16.gmra.mxu0 %v823
          %v1021 = vpop.f32.mrf.mxu0
          %v1022 = vadd.f32 0.0, %v1021
          %v1023 = vpop.f32.mrf.mxu0
          %v1024 = vpop.f32.mrf.mxu0
          %v1025 = vadd.f32 0.0, %v1024
          %v1026 = vpop.f32.mrf.mxu0
          %1027 = vmatprep.mubr.bf16.mxu0 %v826
          %1028 = vmatmul.mubr.bf16.gmra.mxu0 %v825
          %v1029 = vpop.f32.mrf.mxu0
          %v1030 = vadd.f32 0.0, %v1029
          %v1031 = vpop.f32.mrf.mxu0
          %v1032 = vpop.f32.mrf.mxu0
          %v1033 = vadd.f32 0.0, %v1032
          %v1034 = vpop.f32.mrf.mxu0
          %1035 = vdwg.mxu0
          %v1036 = vmax.f32 %v974, 0.0
          %v1037 = vmax.f32 %v977, 0.0
          %v1038 = vmax.f32 %v982, 0.0
          %v1039 = vmax.f32 %v985, 0.0
          %v1040 = vmax.f32 %v990, 0.0
          %v1041 = vmax.f32 %v993, 0.0
          %v1042 = vmax.f32 %v998, 0.0
          %v1043 = vmax.f32 %v1001, 0.0
          %v1044 = vmax.f32 %v1006, 0.0
          %v1045 = vmax.f32 %v1009, 0.0
          %v1046 = vmax.f32 %v1014, 0.0
          %v1047 = vmax.f32 %v1017, 0.0
          %v1048 = vmax.f32 %v1022, 0.0
          %v1049 = vmax.f32 %v1025, 0.0
          %v1050 = vmax.f32 %v1030, 0.0
          %v1051 = vmax.f32 %v1033, 0.0
          %v1052 = vld [vmem:[%s339] sm:$0xf]
          %v1053 = vld [vmem:[%s339 + $0x4] sm:$0xf]
          %v1054 = vld [vmem:[%s339 + $0x8] sm:$0xf]
          %v1055 = vld [vmem:[%s339 + $0xc] sm:$0xf]
          %v1056 = vld [vmem:[%s339 + $0x10] sm:$0xf]
          %v1057 = vld [vmem:[%s339 + $0x14] sm:$0xf]
          %v1058 = vld [vmem:[%s339 + $0x18] sm:$0xf]
          %v1059 = vld [vmem:[%s339 + $0x1c] sm:$0xf]
          %v1060 = vld [vmem:[%s339 + $0x20] sm:$0xf]
          %v1061 = vld [vmem:[%s339 + $0x24] sm:$0xf]
          %v1062 = vld [vmem:[%s339 + $0x28] sm:$0xf]
          %v1063 = vld [vmem:[%s339 + $0x2c] sm:$0xf]
          %v1064 = vld [vmem:[%s339 + $0x30] sm:$0xf]
          %v1065 = vld [vmem:[%s339 + $0x34] sm:$0xf]
          %v1066 = vld [vmem:[%s339 + $0x38] sm:$0xf]
          %v1067 = vld [vmem:[%s339 + $0x3c] sm:$0xf]
          %v1068 = vunpack.c.l.bf16 %v1052
          %v1069 = vunpack.c.l.bf16 %v1053
          %v1070 = vunpack.c.l.bf16 %v1054
          %v1071 = vunpack.c.l.bf16 %v1055
          %v1072 = vunpack.c.l.bf16 %v1056
          %v1073 = vunpack.c.l.bf16 %v1057
          %v1074 = vunpack.c.l.bf16 %v1058
          %v1075 = vunpack.c.l.bf16 %v1059
          %v1076 = vunpack.c.l.bf16 %v1060
          %v1077 = vunpack.c.l.bf16 %v1061
          %v1078 = vunpack.c.l.bf16 %v1062
          %v1079 = vunpack.c.l.bf16 %v1063
          %v1080 = vunpack.c.l.bf16 %v1064
          %v1081 = vunpack.c.l.bf16 %v1065
          %v1082 = vunpack.c.l.bf16 %v1066
          %v1083 = vunpack.c.l.bf16 %v1067
          %v1084 = vmul.f32 %v1036, %v1068
          %v1085 = vmul.f32 %v1037, %v1069
          %v1086 = vmul.f32 %v1038, %v1070
          %v1087 = vmul.f32 %v1039, %v1071
          %v1088 = vmul.f32 %v1040, %v1072
          %v1089 = vmul.f32 %v1041, %v1073
          %v1090 = vmul.f32 %v1042, %v1074
          %v1091 = vmul.f32 %v1043, %v1075
          %v1092 = vmul.f32 %v1044, %v1076
          %v1093 = vmul.f32 %v1045, %v1077
          %v1094 = vmul.f32 %v1046, %v1078
          %v1095 = vmul.f32 %v1047, %v1079
          %v1096 = vmul.f32 %v1048, %v1080
          %v1097 = vmul.f32 %v1049, %v1081
          %v1098 = vmul.f32 %v1050, %v1082
          %v1099 = vmul.f32 %v1051, %v1083
          %v1100 = vpack.c.bf16 %v1085, %v1084
          %v1101 = vpack.c.bf16 %v1087, %v1086
          %v1102 = vpack.c.bf16 %v1089, %v1088
          %v1103 = vpack.c.bf16 %v1091, %v1090
          %v1104 = vpack.c.bf16 %v1093, %v1092
          %v1105 = vpack.c.bf16 %v1095, %v1094
          %v1106 = vpack.c.bf16 %v1097, %v1096
          %v1107 = vpack.c.bf16 %v1099, %v1098
          %v1108 = vld [vmem:[#allocation12] sm:$0xf]
          %v1109 = vld [vmem:[#allocation12 + $0x4] sm:$0xf]
          %v1110 = vld [vmem:[#allocation12 + $0x8] sm:$0xf]
          %v1111 = vld [vmem:[#allocation12 + $0xc] sm:$0xf]
          %v1112 = vld [vmem:[#allocation12 + $0x10] sm:$0xf]
          %v1113 = vld [vmem:[#allocation12 + $0x14] sm:$0xf]
          %v1114 = vld [vmem:[#allocation12 + $0x18] sm:$0xf]
          %v1115 = vld [vmem:[#allocation12 + $0x1c] sm:$0xf]
          %v1116 = vld [vmem:[#allocation12 + $0x20] sm:$0xf]
          %v1117 = vld [vmem:[#allocation12 + $0x24] sm:$0xf]
          %v1118 = vld [vmem:[#allocation12 + $0x28] sm:$0xf]
          %v1119 = vld [vmem:[#allocation12 + $0x2c] sm:$0xf]
          %v1120 = vld [vmem:[#allocation12 + $0x30] sm:$0xf]
          %v1121 = vld [vmem:[#allocation12 + $0x34] sm:$0xf]
          %v1122 = vld [vmem:[#allocation12 + $0x38] sm:$0xf]
          %v1123 = vld [vmem:[#allocation12 + $0x3c] sm:$0xf]
          %v1140 = vunpack.c.l.b16 %v1108
          %v1141 = vunpack.c.l.b16 %v1109
          %v1142 = vunpack.c.l.b16 %v1110
          %v1143 = vunpack.c.l.b16 %v1111
          %v1144 = vunpack.c.l.b16 %v1112
          %v1145 = vunpack.c.l.b16 %v1113
          %v1146 = vunpack.c.l.b16 %v1114
          %v1147 = vunpack.c.l.b16 %v1115
          %v1148 = vunpack.c.l.b16 %v1116
          %v1149 = vunpack.c.l.b16 %v1117
          %v1150 = vunpack.c.l.b16 %v1118
          %v1151 = vunpack.c.l.b16 %v1119
          %v1152 = vunpack.c.l.b16 %v1120
          %v1153 = vunpack.c.l.b16 %v1121
          %v1154 = vunpack.c.l.b16 %v1122
          %v1155 = vunpack.c.l.b16 %v1123
          %v1156 = vpack.c.b16 %v1141, %v1140
          %v1157 = vpack.c.b16 %v1143, %v1142
          %v1158 = vpack.c.b16 %v1145, %v1144
          %v1159 = vpack.c.b16 %v1147, %v1146
          %v1160 = vpack.c.b16 %v1149, %v1148
          %v1161 = vpack.c.b16 %v1151, %v1150
          %v1162 = vpack.c.b16 %v1153, %v1152
          %v1163 = vpack.c.b16 %v1155, %v1154
          %1172 = vmatprep.subr.bf16.mxu0 0
          %1173 = vmatpush1.bf16.msra.mxu0 %v1163
          %1174 = vmatprep.subr.bf16.mxu0 0
          %1175 = vmatpush1.bf16.msra.mxu0 %v1162
          %1176 = vmatprep.subr.bf16.mxu0 0
          %1177 = vmatpush1.bf16.msra.mxu0 %v1161
          %1178 = vmatprep.subr.bf16.mxu0 0
          %1179 = vmatpush1.bf16.msra.mxu0 %v1160
          %1180 = vmatprep.subr.bf16.mxu0 0
          %1181 = vmatpush1.bf16.msra.mxu0 %v1159
          %1182 = vmatprep.subr.bf16.mxu0 0
          %1183 = vmatpush1.bf16.msra.mxu0 %v1158
          %1184 = vmatprep.subr.bf16.mxu0 0
          %1185 = vmatpush1.bf16.msra.mxu0 %v1157
          %1186 = vmatprep.subr.bf16.mxu0 0
          %1187 = vmatpush1.bf16.msra.mxu0 %v1156
          %1188 = vmatprep.subr.bf16.mxu0 0
          %1189 = vmatpush2.bf16.msra.mxu0 0
          %1190 = vmatprep.subr.bf16.mxu0 0
          %1191 = vmatpush2.bf16.msra.mxu0 0
          %1192 = vmatprep.subr.bf16.mxu0 0
          %1193 = vmatpush2.bf16.msra.mxu0 0
          %1194 = vmatprep.subr.bf16.mxu0 0
          %1195 = vmatpush2.bf16.msra.mxu0 0
          %1196 = vmatprep.subr.bf16.mxu0 0
          %1197 = vmatpush2.bf16.msra.mxu0 0
          %1198 = vmatprep.subr.bf16.mxu0 0
          %1199 = vmatpush2.bf16.msra.mxu0 0
          %1200 = vmatprep.subr.bf16.mxu0 0
          %1201 = vmatpush2.bf16.msra.mxu0 0
          %1202 = vmatprep.subr.bf16.mxu0 0
          %1203 = vmatpush2.bf16.msra.mxu0 0
          %1204 = vmatprep.mubr.bf16.mxu0 0
          %1205 = vmatmul.mubr.bf16.gmra.mxu0 %v1100
          %v1206 = vpop.f32.mrf.mxu0
          %v1207 = vadd.f32 0.0, %v1206
          %v1208 = vpop.f32.mrf.mxu0
          %v1209 = vpop.f32.mrf.mxu0
          %v1210 = vadd.f32 0.0, %v1209
          %v1211 = vpop.f32.mrf.mxu0
          %1212 = vmatprep.mubr.bf16.mxu0 0
          %1213 = vmatmul.mubr.bf16.gmra.mxu0 %v1101
          %v1214 = vpop.f32.mrf.mxu0
          %v1215 = vadd.f32 0.0, %v1214
          %v1216 = vpop.f32.mrf.mxu0
          %v1217 = vpop.f32.mrf.mxu0
          %v1218 = vadd.f32 0.0, %v1217
          %v1219 = vpop.f32.mrf.mxu0
          %1220 = vmatprep.mubr.bf16.mxu0 0
          %1221 = vmatmul.mubr.bf16.gmra.mxu0 %v1102
          %v1222 = vpop.f32.mrf.mxu0
          %v1223 = vadd.f32 0.0, %v1222
          %v1224 = vpop.f32.mrf.mxu0
          %v1225 = vpop.f32.mrf.mxu0
          %v1226 = vadd.f32 0.0, %v1225
          %v1227 = vpop.f32.mrf.mxu0
          %1228 = vmatprep.mubr.bf16.mxu0 0
          %1229 = vmatmul.mubr.bf16.gmra.mxu0 %v1103
          %v1230 = vpop.f32.mrf.mxu0
          %v1231 = vadd.f32 0.0, %v1230
          %v1232 = vpop.f32.mrf.mxu0
          %v1233 = vpop.f32.mrf.mxu0
          %v1234 = vadd.f32 0.0, %v1233
          %v1235 = vpop.f32.mrf.mxu0
          %1236 = vmatprep.mubr.bf16.mxu0 0
          %1237 = vmatmul.mubr.bf16.gmra.mxu0 %v1104
          %v1238 = vpop.f32.mrf.mxu0
          %v1239 = vadd.f32 0.0, %v1238
          %v1240 = vpop.f32.mrf.mxu0
          %v1241 = vpop.f32.mrf.mxu0
          %v1242 = vadd.f32 0.0, %v1241
          %v1243 = vpop.f32.mrf.mxu0
          %1244 = vmatprep.mubr.bf16.mxu0 0
          %1245 = vmatmul.mubr.bf16.gmra.mxu0 %v1105
          %v1246 = vpop.f32.mrf.mxu0
          %v1247 = vadd.f32 0.0, %v1246
          %v1248 = vpop.f32.mrf.mxu0
          %v1249 = vpop.f32.mrf.mxu0
          %v1250 = vadd.f32 0.0, %v1249
          %v1251 = vpop.f32.mrf.mxu0
          %1252 = vmatprep.mubr.bf16.mxu0 0
          %1253 = vmatmul.mubr.bf16.gmra.mxu0 %v1106
          %v1254 = vpop.f32.mrf.mxu0
          %v1255 = vadd.f32 0.0, %v1254
          %v1256 = vpop.f32.mrf.mxu0
          %v1257 = vpop.f32.mrf.mxu0
          %v1258 = vadd.f32 0.0, %v1257
          %v1259 = vpop.f32.mrf.mxu0
          %1260 = vmatprep.mubr.bf16.mxu0 0
          %1261 = vmatmul.mubr.bf16.gmra.mxu0 %v1107
          %v1262 = vpop.f32.mrf.mxu0
          %v1263 = vadd.f32 0.0, %v1262
          %v1264 = vpop.f32.mrf.mxu0
          %v1265 = vpop.f32.mrf.mxu0
          %v1266 = vadd.f32 0.0, %v1265
          %v1267 = vpop.f32.mrf.mxu0
          %1268 = vdwg.mxu0
          %v1269 = vpack.c.bf16 %v1210, %v1207
          %v1270 = vpack.c.bf16 %v1218, %v1215
          %v1271 = vpack.c.bf16 %v1226, %v1223
          %v1272 = vpack.c.bf16 %v1234, %v1231
          %v1273 = vpack.c.bf16 %v1242, %v1239
          %v1274 = vpack.c.bf16 %v1250, %v1247
          %v1275 = vpack.c.bf16 %v1258, %v1255
          %v1276 = vpack.c.bf16 %v1266, %v1263
          %v1285 = vunpack.c.l.b16 %v1269
          %v1286 = vunpack.c.h.b16 %v1269
          %v1287 = vunpack.c.l.b16 %v1270
          %v1288 = vunpack.c.h.b16 %v1270
          %v1289 = vunpack.c.l.b16 %v1271
          %v1290 = vunpack.c.h.b16 %v1271
          %v1291 = vunpack.c.l.b16 %v1272
          %v1292 = vunpack.c.h.b16 %v1272
          %v1293 = vunpack.c.l.b16 %v1273
          %v1294 = vunpack.c.h.b16 %v1273
          %v1295 = vunpack.c.l.b16 %v1274
          %v1296 = vunpack.c.h.b16 %v1274
          %v1297 = vunpack.c.l.b16 %v1275
          %v1298 = vunpack.c.h.b16 %v1275
          %v1299 = vunpack.c.l.b16 %v1276
          %v1300 = vunpack.c.h.b16 %v1276
          %v1301 = vpack.c.b16 %v1285, %v1285
          %v1302 = vpack.c.b16 %v1286, %v1286
          %v1303 = vpack.c.b16 %v1287, %v1287
          %v1304 = vpack.c.b16 %v1288, %v1288
          %v1305 = vpack.c.b16 %v1289, %v1289
          %v1306 = vpack.c.b16 %v1290, %v1290
          %v1307 = vpack.c.b16 %v1291, %v1291
          %v1308 = vpack.c.b16 %v1292, %v1292
          %v1309 = vpack.c.b16 %v1293, %v1293
          %v1310 = vpack.c.b16 %v1294, %v1294
          %v1311 = vpack.c.b16 %v1295, %v1295
          %v1312 = vpack.c.b16 %v1296, %v1296
          %v1313 = vpack.c.b16 %v1297, %v1297
          %v1314 = vpack.c.b16 %v1298, %v1298
          %v1315 = vpack.c.b16 %v1299, %v1299
          %v1316 = vpack.c.b16 %v1300, %v1300
          %s1333 = sshra.s32 %s397, 3
          %s1334 = sand.u32 %s397, 7
          %s1335 = smul.addr %s1333, 4
          %s1336 = scalar_lea.vmem [#allocation3], %s1335
          %1337 = vst [vmem:[%s1336] sm:$0xf] %v1301
          %1338 = vst [vmem:[%s1336 + $0x4] sm:$0xf] %v1302
          %1339 = vst [vmem:[%s1336 + $0x8] sm:$0xf] %v1303
          %1340 = vst [vmem:[%s1336 + $0xc] sm:$0xf] %v1304
          %1341 = vst [vmem:[%s1336 + $0x10] sm:$0xf] %v1305
          %1342 = vst [vmem:[%s1336 + $0x14] sm:$0xf] %v1306
          %1343 = vst [vmem:[%s1336 + $0x18] sm:$0xf] %v1307
          %1344 = vst [vmem:[%s1336 + $0x1c] sm:$0xf] %v1308
          %1345 = vst [vmem:[%s1336 + $0x20] sm:$0xf] %v1309
          %1346 = vst [vmem:[%s1336 + $0x24] sm:$0xf] %v1310
          %1347 = vst [vmem:[%s1336 + $0x28] sm:$0xf] %v1311
          %1348 = vst [vmem:[%s1336 + $0x2c] sm:$0xf] %v1312
          %1349 = vst [vmem:[%s1336 + $0x30] sm:$0xf] %v1313
          %1350 = vst [vmem:[%s1336 + $0x34] sm:$0xf] %v1314
          %1351 = vst [vmem:[%s1336 + $0x38] sm:$0xf] %v1315
          %1352 = vst [vmem:[%s1336 + $0x3c] sm:$0xf] %v1316
        $region68: #{tpu_custom_call.1} parent=39 // pred_fallthru
          _
        %p1353 = scmp.eq.s32.totalorder %s30, 2
        // Predicated region
        $region69: #{tpu_custom_call.1} parent=39 // pred_check
          %p1354 = pneg %p1353
        $region70: #{tpu_custom_call.1} parent=39 // pred_check_branch
          %1356 = sbr.rel (%p1354) target = $region72
        $region71: #{tpu_custom_call.1} parent=39 // pred_region
          %v1357 = vld [vmem:[%s330] sm:$0xff]
          %v1358 = vld [vmem:[%s330 + $0x8] sm:$0xff]
          %v1359 = vld [vmem:[%s330 + $0x10] sm:$0xff]
          %v1360 = vld [vmem:[%s330 + $0x18] sm:$0xff]
          %v1361 = vld [vmem:[%s330 + $0x20] sm:$0xff]
          %v1362 = vld [vmem:[%s330 + $0x28] sm:$0xff]
          %v1363 = vld [vmem:[%s330 + $0x30] sm:$0xff]
          %v1364 = vld [vmem:[%s330 + $0x38] sm:$0xff]
          %v1365 = vld [vmem:[%s330 + $0x40] sm:$0xff]
          %v1366 = vld [vmem:[%s330 + $0x48] sm:$0xff]
          %v1367 = vld [vmem:[%s330 + $0x50] sm:$0xff]
          %v1368 = vld [vmem:[%s330 + $0x58] sm:$0xff]
          %v1369 = vld [vmem:[%s330 + $0x60] sm:$0xff]
          %v1370 = vld [vmem:[%s330 + $0x68] sm:$0xff]
          %v1371 = vld [vmem:[%s330 + $0x70] sm:$0xff]
          %v1372 = vld [vmem:[%s330 + $0x78] sm:$0xff]
          %v1373 = vld [vmem:[#allocation3] sm:$0xf]
          %v1374 = vld [vmem:[#allocation3 + $0x4] sm:$0xf]
          %v1375 = vld [vmem:[#allocation3 + $0x8] sm:$0xf]
          %v1376 = vld [vmem:[#allocation3 + $0xc] sm:$0xf]
          %v1377 = vld [vmem:[#allocation3 + $0x10] sm:$0xf]
          %v1378 = vld [vmem:[#allocation3 + $0x14] sm:$0xf]
          %v1379 = vld [vmem:[#allocation3 + $0x18] sm:$0xf]
          %v1380 = vld [vmem:[#allocation3 + $0x1c] sm:$0xf]
          %v1381 = vld [vmem:[#allocation3 + $0x20] sm:$0xf]
          %v1382 = vld [vmem:[#allocation3 + $0x24] sm:$0xf]
          %v1383 = vld [vmem:[#allocation3 + $0x28] sm:$0xf]
          %v1384 = vld [vmem:[#allocation3 + $0x2c] sm:$0xf]
          %v1385 = vld [vmem:[#allocation3 + $0x30] sm:$0xf]
          %v1386 = vld [vmem:[#allocation3 + $0x34] sm:$0xf]
          %v1387 = vld [vmem:[#allocation3 + $0x38] sm:$0xf]
          %v1388 = vld [vmem:[#allocation3 + $0x3c] sm:$0xf]
          %v1389 = vld [vmem:[#allocation3 + $0x40] sm:$0xf]
          %v1390 = vld [vmem:[#allocation3 + $0x44] sm:$0xf]
          %v1391 = vld [vmem:[#allocation3 + $0x48] sm:$0xf]
          %v1392 = vld [vmem:[#allocation3 + $0x4c] sm:$0xf]
          %v1393 = vld [vmem:[#allocation3 + $0x50] sm:$0xf]
          %v1394 = vld [vmem:[#allocation3 + $0x54] sm:$0xf]
          %v1395 = vld [vmem:[#allocation3 + $0x58] sm:$0xf]
          %v1396 = vld [vmem:[#allocation3 + $0x5c] sm:$0xf]
          %v1397 = vld [vmem:[#allocation3 + $0x60] sm:$0xf]
          %v1398 = vld [vmem:[#allocation3 + $0x64] sm:$0xf]
          %v1399 = vld [vmem:[#allocation3 + $0x68] sm:$0xf]
          %v1400 = vld [vmem:[#allocation3 + $0x6c] sm:$0xf]
          %v1401 = vld [vmem:[#allocation3 + $0x70] sm:$0xf]
          %v1402 = vld [vmem:[#allocation3 + $0x74] sm:$0xf]
          %v1403 = vld [vmem:[#allocation3 + $0x78] sm:$0xf]
          %v1404 = vld [vmem:[#allocation3 + $0x7c] sm:$0xf]
          %v1421 = vunpack.c.l.b16 %v1357
          %v1422 = vunpack.c.h.b16 %v1357
          %v1423 = vunpack.c.l.b16 %v1358
          %v1424 = vunpack.c.h.b16 %v1358
          %v1425 = vunpack.c.l.b16 %v1359
          %v1426 = vunpack.c.h.b16 %v1359
          %v1427 = vunpack.c.l.b16 %v1360
          %v1428 = vunpack.c.h.b16 %v1360
          %v1429 = vunpack.c.l.b16 %v1361
          %v1430 = vunpack.c.h.b16 %v1361
          %v1431 = vunpack.c.l.b16 %v1362
          %v1432 = vunpack.c.h.b16 %v1362
          %v1433 = vunpack.c.l.b16 %v1363
          %v1434 = vunpack.c.h.b16 %v1363
          %v1435 = vunpack.c.l.b16 %v1364
          %v1436 = vunpack.c.h.b16 %v1364
          %v1437 = vunpack.c.l.b16 %v1365
          %v1438 = vunpack.c.h.b16 %v1365
          %v1439 = vunpack.c.l.b16 %v1366
          %v1440 = vunpack.c.h.b16 %v1366
          %v1441 = vunpack.c.l.b16 %v1367
          %v1442 = vunpack.c.h.b16 %v1367
          %v1443 = vunpack.c.l.b16 %v1368
          %v1444 = vunpack.c.h.b16 %v1368
          %v1445 = vunpack.c.l.b16 %v1369
          %v1446 = vunpack.c.h.b16 %v1369
          %v1447 = vunpack.c.l.b16 %v1370
          %v1448 = vunpack.c.h.b16 %v1370
          %v1449 = vunpack.c.l.b16 %v1371
          %v1450 = vunpack.c.h.b16 %v1371
          %v1451 = vunpack.c.l.b16 %v1372
          %v1452 = vunpack.c.h.b16 %v1372
          %v1453 = vpack.c.b16 %v1423, %v1421
          %v1454 = vpack.c.b16 %v1424, %v1422
          %v1455 = vpack.c.b16 %v1427, %v1425
          %v1456 = vpack.c.b16 %v1428, %v1426
          %v1457 = vpack.c.b16 %v1431, %v1429
          %v1458 = vpack.c.b16 %v1432, %v1430
          %v1459 = vpack.c.b16 %v1435, %v1433
          %v1460 = vpack.c.b16 %v1436, %v1434
          %v1461 = vpack.c.b16 %v1439, %v1437
          %v1462 = vpack.c.b16 %v1440, %v1438
          %v1463 = vpack.c.b16 %v1443, %v1441
          %v1464 = vpack.c.b16 %v1444, %v1442
          %v1465 = vpack.c.b16 %v1447, %v1445
          %v1466 = vpack.c.b16 %v1448, %v1446
          %v1467 = vpack.c.b16 %v1451, %v1449
          %v1468 = vpack.c.b16 %v1452, %v1450
          %v1517 = vunpack.c.l.b16 %v1373
          %v1518 = vunpack.c.l.b16 %v1374
          %v1519 = vunpack.c.l.b16 %v1375
          %v1520 = vunpack.c.l.b16 %v1376
          %v1521 = vunpack.c.l.b16 %v1377
          %v1522 = vunpack.c.l.b16 %v1378
          %v1523 = vunpack.c.l.b16 %v1379
          %v1524 = vunpack.c.l.b16 %v1380
          %v1525 = vunpack.c.l.b16 %v1381
          %v1526 = vunpack.c.l.b16 %v1382
          %v1527 = vunpack.c.l.b16 %v1383
          %v1528 = vunpack.c.l.b16 %v1384
          %v1529 = vunpack.c.l.b16 %v1385
          %v1530 = vunpack.c.l.b16 %v1386
          %v1531 = vunpack.c.l.b16 %v1387
          %v1532 = vunpack.c.l.b16 %v1388
          %v1533 = vunpack.c.l.b16 %v1389
          %v1534 = vunpack.c.l.b16 %v1390
          %v1535 = vunpack.c.l.b16 %v1391
          %v1536 = vunpack.c.l.b16 %v1392
          %v1537 = vunpack.c.l.b16 %v1393
          %v1538 = vunpack.c.l.b16 %v1394
          %v1539 = vunpack.c.l.b16 %v1395
          %v1540 = vunpack.c.l.b16 %v1396
          %v1541 = vunpack.c.l.b16 %v1397
          %v1542 = vunpack.c.l.b16 %v1398
          %v1543 = vunpack.c.l.b16 %v1399
          %v1544 = vunpack.c.l.b16 %v1400
          %v1545 = vunpack.c.l.b16 %v1401
          %v1546 = vunpack.c.l.b16 %v1402
          %v1547 = vunpack.c.l.b16 %v1403
          %v1548 = vunpack.c.l.b16 %v1404
          %v1549 = vpack.c.b16 %v1518, %v1517
          %v1550 = vpack.c.b16 %v1520, %v1519
          %v1551 = vpack.c.b16 %v1522, %v1521
          %v1552 = vpack.c.b16 %v1524, %v1523
          %v1553 = vpack.c.b16 %v1526, %v1525
          %v1554 = vpack.c.b16 %v1528, %v1527
          %v1555 = vpack.c.b16 %v1530, %v1529
          %v1556 = vpack.c.b16 %v1532, %v1531
          %v1557 = vpack.c.b16 %v1534, %v1533
          %v1558 = vpack.c.b16 %v1536, %v1535
          %v1559 = vpack.c.b16 %v1538, %v1537
          %v1560 = vpack.c.b16 %v1540, %v1539
          %v1561 = vpack.c.b16 %v1542, %v1541
          %v1562 = vpack.c.b16 %v1544, %v1543
          %v1563 = vpack.c.b16 %v1546, %v1545
          %v1564 = vpack.c.b16 %v1548, %v1547
          %1581 = vmatprep.subr.bf16.mxu0 0
          %1582 = vmatpush1.bf16.msra.mxu0 %v1556
          %1583 = vmatprep.subr.bf16.mxu0 0
          %1584 = vmatpush1.bf16.msra.mxu0 %v1555
          %1585 = vmatprep.subr.bf16.mxu0 0
          %1586 = vmatpush1.bf16.msra.mxu0 %v1554
          %1587 = vmatprep.subr.bf16.mxu0 0
          %1588 = vmatpush1.bf16.msra.mxu0 %v1553
          %1589 = vmatprep.subr.bf16.mxu0 0
          %1590 = vmatpush1.bf16.msra.mxu0 %v1552
          %1591 = vmatprep.subr.bf16.mxu0 0
          %1592 = vmatpush1.bf16.msra.mxu0 %v1551
          %1593 = vmatprep.subr.bf16.mxu0 0
          %1594 = vmatpush1.bf16.msra.mxu0 %v1550
          %1595 = vmatprep.subr.bf16.mxu0 0
          %1596 = vmatpush1.bf16.msra.mxu0 %v1549
          %1597 = vmatprep.subr.bf16.mxu0 0
          %1598 = vmatpush2.bf16.msra.mxu0 %v1564
          %1599 = vmatprep.subr.bf16.mxu0 0
          %1600 = vmatpush2.bf16.msra.mxu0 %v1563
          %1601 = vmatprep.subr.bf16.mxu0 0
          %1602 = vmatpush2.bf16.msra.mxu0 %v1562
          %1603 = vmatprep.subr.bf16.mxu0 0
          %1604 = vmatpush2.bf16.msra.mxu0 %v1561
          %1605 = vmatprep.subr.bf16.mxu0 0
          %1606 = vmatpush2.bf16.msra.mxu0 %v1560
          %1607 = vmatprep.subr.bf16.mxu0 0
          %1608 = vmatpush2.bf16.msra.mxu0 %v1559
          %1609 = vmatprep.subr.bf16.mxu0 0
          %1610 = vmatpush2.bf16.msra.mxu0 %v1558
          %1611 = vmatprep.subr.bf16.mxu0 0
          %1612 = vmatpush2.bf16.msra.mxu0 %v1557
          %1613 = vmatprep.mubr.bf16.mxu0 %v1454
          %1614 = vmatmul.mubr.bf16.gmra.mxu0 %v1453
          %v1615 = vpop.f32.mrf.mxu0
          %v1616 = vadd.f32 0.0, %v1615
          %v1617 = vpop.f32.mrf.mxu0
          %v1618 = vpop.f32.mrf.mxu0
          %v1619 = vadd.f32 0.0, %v1618
          %v1620 = vpop.f32.mrf.mxu0
          %1621 = vmatprep.mubr.bf16.mxu0 %v1456
          %1622 = vmatmul.mubr.bf16.gmra.mxu0 %v1455
          %v1623 = vpop.f32.mrf.mxu0
          %v1624 = vadd.f32 0.0, %v1623
          %v1625 = vpop.f32.mrf.mxu0
          %v1626 = vpop.f32.mrf.mxu0
          %v1627 = vadd.f32 0.0, %v1626
          %v1628 = vpop.f32.mrf.mxu0
          %1629 = vmatprep.mubr.bf16.mxu0 %v1458
          %1630 = vmatmul.mubr.bf16.gmra.mxu0 %v1457
          %v1631 = vpop.f32.mrf.mxu0
          %v1632 = vadd.f32 0.0, %v1631
          %v1633 = vpop.f32.mrf.mxu0
          %v1634 = vpop.f32.mrf.mxu0
          %v1635 = vadd.f32 0.0, %v1634
          %v1636 = vpop.f32.mrf.mxu0
          %1637 = vmatprep.mubr.bf16.mxu0 %v1460
          %1638 = vmatmul.mubr.bf16.gmra.mxu0 %v1459
          %v1639 = vpop.f32.mrf.mxu0
          %v1640 = vadd.f32 0.0, %v1639
          %v1641 = vpop.f32.mrf.mxu0
          %v1642 = vpop.f32.mrf.mxu0
          %v1643 = vadd.f32 0.0, %v1642
          %v1644 = vpop.f32.mrf.mxu0
          %1645 = vmatprep.mubr.bf16.mxu0 %v1462
          %1646 = vmatmul.mubr.bf16.gmra.mxu0 %v1461
          %v1647 = vpop.f32.mrf.mxu0
          %v1648 = vadd.f32 0.0, %v1647
          %v1649 = vpop.f32.mrf.mxu0
          %v1650 = vpop.f32.mrf.mxu0
          %v1651 = vadd.f32 0.0, %v1650
          %v1652 = vpop.f32.mrf.mxu0
          %1653 = vmatprep.mubr.bf16.mxu0 %v1464
          %1654 = vmatmul.mubr.bf16.gmra.mxu0 %v1463
          %v1655 = vpop.f32.mrf.mxu0
          %v1656 = vadd.f32 0.0, %v1655
          %v1657 = vpop.f32.mrf.mxu0
          %v1658 = vpop.f32.mrf.mxu0
          %v1659 = vadd.f32 0.0, %v1658
          %v1660 = vpop.f32.mrf.mxu0
          %1661 = vmatprep.mubr.bf16.mxu0 %v1466
          %1662 = vmatmul.mubr.bf16.gmra.mxu0 %v1465
          %v1663 = vpop.f32.mrf.mxu0
          %v1664 = vadd.f32 0.0, %v1663
          %v1665 = vpop.f32.mrf.mxu0
          %v1666 = vpop.f32.mrf.mxu0
          %v1667 = vadd.f32 0.0, %v1666
          %v1668 = vpop.f32.mrf.mxu0
          %1669 = vmatprep.mubr.bf16.mxu0 %v1468
          %1670 = vmatmul.mubr.bf16.gmra.mxu0 %v1467
          %v1671 = vpop.f32.mrf.mxu0
          %v1672 = vadd.f32 0.0, %v1671
          %v1673 = vpop.f32.mrf.mxu0
          %v1674 = vpop.f32.mrf.mxu0
          %v1675 = vadd.f32 0.0, %v1674
          %v1676 = vpop.f32.mrf.mxu0
          %1677 = vdwg.mxu0
          %1678 = vst [vmem:[%s383] sm:$0xff] %v1616
          %1679 = vst [vmem:[%s383 + $0x8] sm:$0xff] %v1619
          %1680 = vst [vmem:[%s383 + $0x10] sm:$0xff] %v1624
          %1681 = vst [vmem:[%s383 + $0x18] sm:$0xff] %v1627
          %1682 = vst [vmem:[%s383 + $0x20] sm:$0xff] %v1632
          %1683 = vst [vmem:[%s383 + $0x28] sm:$0xff] %v1635
          %1684 = vst [vmem:[%s383 + $0x30] sm:$0xff] %v1640
          %1685 = vst [vmem:[%s383 + $0x38] sm:$0xff] %v1643
          %1686 = vst [vmem:[%s383 + $0x40] sm:$0xff] %v1648
          %1687 = vst [vmem:[%s383 + $0x48] sm:$0xff] %v1651
          %1688 = vst [vmem:[%s383 + $0x50] sm:$0xff] %v1656
          %1689 = vst [vmem:[%s383 + $0x58] sm:$0xff] %v1659
          %1690 = vst [vmem:[%s383 + $0x60] sm:$0xff] %v1664
          %1691 = vst [vmem:[%s383 + $0x68] sm:$0xff] %v1667
          %1692 = vst [vmem:[%s383 + $0x70] sm:$0xff] %v1672
          %1693 = vst [vmem:[%s383 + $0x78] sm:$0xff] %v1675
        $region72: #{tpu_custom_call.1} parent=39 // pred_fallthru
          _
        %s1694 = sand.u32 %s182, 1
        %s1695 = scalar_lea.sflag [#allocation6], %s1694
        %s1696 = sand.u32 %s182, 1
        %s1697 = smul.addr %s1696, 128
        %s1698 = scalar_lea.vmem [#allocation13], %s1697
        // Predicated region
        $region73: #{tpu_custom_call.1} parent=39 // pred_check
          %p1699 = pneg %p192
        $region74: #{tpu_custom_call.1} parent=39 // pred_check_branch
          %1701 = sbr.rel (%p1699) target = $region76
        $region75: #{tpu_custom_call.1} parent=39 // pred_region
          %p1702 = scmp.eq.s32.totalorder %s30, 2
          %s1703 = scalar_select %p1702, %s31, 0
          %s1704 = smul.u32 16, %s1703
          %s1706 = ssub.s32 2048, 2048
          %1707 = vsyncadd %s1695, %s1706
          %s1708 = smul.addr %s1704, 128
          %s1709 = scalar_lea.hbm %s5, %s1708
          %s1710 = sshll.u32 %s1698, 4
          %s1711 = int_to_ptr.vmem [resolvable:$true] %s1710
          %1716 = dma.vmem_to_hbm [thread:$0]  %s1711, 2048, %s1709, %s1695, 128, 128, 8
        $region76: #{tpu_custom_call.1} parent=39 // pred_fallthru
          _
      $region40: #{tpu_custom_call.1} parent=5 // pred_fallthru
        _
      %p1717 = scmp.le.s32.totalorder 2, %s21
      // Predicated region
      $region77: #{tpu_custom_call.1} parent=5 // pred_check
        %p1718 = pneg %p1717
      $region78: #{tpu_custom_call.1} parent=5 // pred_check_branch
        %1720 = sbr.rel (%p1718) target = $region80
      $region79: #{tpu_custom_call.1} parent=5 // pred_region
        %s1721 = ssub.s32 %s21, 2
        // Predicated region
        $region81: #{tpu_custom_call.1} parent=79 // pred_check
          %p1722 = pneg %p198
        $region82: #{tpu_custom_call.1} parent=79 // pred_check_branch
          %1724 = sbr.rel (%p1722) target = $region84
        $region83: #{tpu_custom_call.1} parent=79 // pred_region
          %s1725 = sand.u32 %s183, 1
          %s1726 = scalar_lea.sflag [#allocation6], %s1725
          %s1727 = sand.u32 %s183, 1
          %s1728 = smul.addr %s1727, 128
          %s1729 = scalar_lea.vmem [#allocation13], %s1728
          %1730 = dma.done %s1726, 2048
        $region84: #{tpu_custom_call.1} parent=79 // pred_fallthru
          _
      $region80: #{tpu_custom_call.1} parent=5 // pred_fallthru
        _
    $region6: #{tpu_custom_call.1} parent=1 // loop_footer
      %s25 = sadd.s32 1, %s21
    $region7: #{tpu_custom_call.1} parent=1 // loop_footer_branch
      %20 = sbr.rel target = $region3
    $region8: #{tpu_custom_call.1} parent=1 // loop_exit
      _
    %1731 = vsyncpa [#allocation5], 1
    %s1732 = scalar_lea.sflag [#allocation5], 1
    %1733 = vsyncpa %s1732, 1
    %1734 = vsyncpa [#allocation8], 1
    %s1735 = scalar_lea.sflag [#allocation8], 1
    %1736 = vsyncpa %s1735, 1
    %1737 = vsyncpa [#allocation11], 1
    %1738 = vsyncpa [#allocation6], 1
    %s1739 = scalar_lea.sflag [#allocation6], 1
    %1740 = vsyncpa %s1739, 1

</llo_original>
